<compile_context>
chip_gen: v5e
topology: v5e:2x2
jax: 0.10.0
libtpu: 0.0.40
codegen_flags: <defaults>
</compile_context>

<pallas_src>
import math
import functools

import jax
import jax.numpy as jnp
from jax.experimental import pallas as pl
from jax.experimental.pallas import tpu as pltpu

# ---- small synthetic BERT config ----
VOCAB = 100
TYPE_VOCAB = 2
MAX_POS = 16
HIDDEN = 32
NUM_HEADS = 2
HEAD_DIM = HIDDEN // NUM_HEADS
INTERMEDIATE = 64
NUM_LAYERS = 2
LN_EPS = 1e-12


def _gelu(x):
    # tanh-approximation GELU (EUP tanh); matches BERT's erf-GELU to ~1e-3.
    return 0.5 * x * (1.0 + jnp.tanh(0.7978845608028654 * (x + 0.044715 * x * x * x)))


def _ln(x, g, b):
    mu = jnp.mean(x, axis=-1, keepdims=True)
    xc = x - mu
    var = jnp.mean(xc * xc, axis=-1, keepdims=True)
    return xc * jax.lax.rsqrt(var + LN_EPS) * g + b


# ---------------- single fused encoder kernel ----------------
def _encoder_kernel(x_ref, mask_ref, emb_g_ref, emb_b_ref,
                    qkv_w_ref, qkv_b_ref, o_w_ref, o_b_ref,
                    ln1_g_ref, ln1_b_ref, f1_w_ref, f1_b_ref,
                    f2_w_ref, f2_b_ref, ln2_g_ref, ln2_b_ref,
                    out_ref):
    scale = 1.0 / math.sqrt(HEAD_DIM)
    mask = mask_ref[0]                                    # (1, S) additive mask
    x = _ln(x_ref[...], emb_g_ref[...], emb_b_ref[...])  # (S, HIDDEN), embedding LN fused in

    # contract dim 1 of both operands -> q @ k^T without an explicit transpose
    qk_dims = (((1,), (1,)), ((), ()))

    for l in range(NUM_LAYERS):                           # static unroll (NUM_LAYERS == 2)
        # ---- fused QKV projection: one (S,H) x (H,3H) MXU matmul ----
        qkv = jnp.dot(x, qkv_w_ref[l], preferred_element_type=jnp.float32) + qkv_b_ref[l]
        o_w_l = o_w_ref[l]                                # (H, H), resident in VMEM
        attn_out = o_b_ref[l]                             # (1, H), broadcasts on first add

        for h in range(NUM_HEADS):                        # static unroll per head
            lo = h * HEAD_DIM
            q = qkv[:, lo:lo + HEAD_DIM]                              # (S, Dh)
            k = qkv[:, HIDDEN + lo:HIDDEN + lo + HEAD_DIM]            # (S, Dh)
            v = qkv[:, 2 * HIDDEN + lo:2 * HIDDEN + lo + HEAD_DIM]    # (S, Dh)

            s = jax.lax.dot_general(q, k, qk_dims,
                                    preferred_element_type=jnp.float32) * scale + mask
            mx = jnp.max(s, axis=-1, keepdims=True)
            p = jnp.exp(s - mx)
            p = p * pl.reciprocal(jnp.sum(p, axis=-1, keepdims=True), approx=True)
            ctx = jnp.dot(p, v, preferred_element_type=jnp.float32)   # (S, Dh)
            # output projection folded in: sum over per-head row blocks of o_w
            attn_out = attn_out + jnp.dot(ctx, o_w_l[lo:lo + HEAD_DIM, :],
                                          preferred_element_type=jnp.float32)

        # residual + LayerNorm fused
        x = _ln(x + attn_out, ln1_g_ref[l], ln1_b_ref[l])

        # ---- FFN with fused GELU + residual + LayerNorm ----
        h1 = _gelu(jnp.dot(x, f1_w_ref[l], preferred_element_type=jnp.float32) + f1_b_ref[l])
        ffn = jnp.dot(h1, f2_w_ref[l], preferred_element_type=jnp.float32) + f2_b_ref[l]
        x = _ln(x + ffn, ln2_g_ref[l], ln2_b_ref[l])

    out_ref[...] = x.astype(out_ref.dtype)


def _const_spec(shape):
    zeros = (0,) * len(shape)
    return pl.BlockSpec(shape, lambda b, zeros=zeros: zeros)


def fused_encoder(x, mask_add, params, B, S):
    return pl.pallas_call(
        _encoder_kernel,
        out_shape=jax.ShapeDtypeStruct((B * S, HIDDEN), jnp.float32),
        grid=(B,),
        in_specs=[
            pl.BlockSpec((S, HIDDEN), lambda b: (b, 0)),          # activation rows of batch b
            pl.BlockSpec((1, 1, S), lambda b: (b, 0, 0)),         # additive mask of batch b
            _const_spec((1, HIDDEN)),                              # emb_ln_g
            _const_spec((1, HIDDEN)),                              # emb_ln_b
            _const_spec((NUM_LAYERS, HIDDEN, 3 * HIDDEN)),         # qkv_w (fused)
            _const_spec((NUM_LAYERS, 1, 3 * HIDDEN)),              # qkv_b
            _const_spec((NUM_LAYERS, HIDDEN, HIDDEN)),             # o_w
            _const_spec((NUM_LAYERS, 1, HIDDEN)),                  # o_b
            _const_spec((NUM_LAYERS, 1, HIDDEN)),                  # ln1_g
            _const_spec((NUM_LAYERS, 1, HIDDEN)),                  # ln1_b
            _const_spec((NUM_LAYERS, HIDDEN, INTERMEDIATE)),       # ffn1_w
            _const_spec((NUM_LAYERS, 1, INTERMEDIATE)),            # ffn1_b
            _const_spec((NUM_LAYERS, INTERMEDIATE, HIDDEN)),       # ffn2_w
            _const_spec((NUM_LAYERS, 1, HIDDEN)),                  # ffn2_b
            _const_spec((NUM_LAYERS, 1, HIDDEN)),                  # ln2_g
            _const_spec((NUM_LAYERS, 1, HIDDEN)),                  # ln2_b
        ],
        out_specs=pl.BlockSpec((S, HIDDEN), lambda b: (b, 0)),
        compiler_params=pltpu.CompilerParams(
            dimension_semantics=("parallel",)),                    # shards batches across v7x TCs
    )(x, mask_add,
      params["emb_ln_g"], params["emb_ln_b"],
      params["qkv_w"], params["qkv_b"], params["o_w"], params["o_b"],
      params["ln1_g"], params["ln1_b"],
      params["f1_w"], params["f1_b"], params["f2_w"], params["f2_b"],
      params["ln2_g"], params["ln2_b"])


# ---------------- parameters ----------------
def init_params(key):
    def dense(k, fan_in, fan_out):
        return 0.02 * jax.random.normal(k, (fan_in, fan_out), jnp.float32)

    keys = jax.random.split(key, 3 + NUM_LAYERS)
    params = {
        "word_emb": 0.02 * jax.random.normal(keys[0], (VOCAB, HIDDEN), jnp.float32),
        "pos_emb": 0.02 * jax.random.normal(keys[1], (MAX_POS, HIDDEN), jnp.float32),
        "type_emb": 0.02 * jax.random.normal(keys[2], (TYPE_VOCAB, HIDDEN), jnp.float32),
        "emb_ln_g": jnp.ones((1, HIDDEN), jnp.float32),
        "emb_ln_b": jnp.zeros((1, HIDDEN), jnp.float32),
    }
    qkv_w, o_w, f1_w, f2_w = [], [], [], []
    for l in range(NUM_LAYERS):
        lk = jax.random.split(keys[3 + l], 6)
        qkv_w.append(jnp.concatenate([dense(lk[0], HIDDEN, HIDDEN),
                                      dense(lk[1], HIDDEN, HIDDEN),
                                      dense(lk[2], HIDDEN, HIDDEN)], axis=1))
        o_w.append(dense(lk[3], HIDDEN, HIDDEN))
        f1_w.append(dense(lk[4], HIDDEN, INTERMEDIATE))
        f2_w.append(dense(lk[5], INTERMEDIATE, HIDDEN))
    params.update({
        "qkv_w": jnp.stack(qkv_w),                                           # (L, H, 3H)
        "qkv_b": jnp.zeros((NUM_LAYERS, 1, 3 * HIDDEN), jnp.float32),
        "o_w": jnp.stack(o_w),                                               # (L, H, H)
        "o_b": jnp.zeros((NUM_LAYERS, 1, HIDDEN), jnp.float32),
        "ln1_g": jnp.ones((NUM_LAYERS, 1, HIDDEN), jnp.float32),
        "ln1_b": jnp.zeros((NUM_LAYERS, 1, HIDDEN), jnp.float32),
        "f1_w": jnp.stack(f1_w),                                             # (L, H, I)
        "f1_b": jnp.zeros((NUM_LAYERS, 1, INTERMEDIATE), jnp.float32),
        "f2_w": jnp.stack(f2_w),                                             # (L, I, H)
        "f2_b": jnp.zeros((NUM_LAYERS, 1, HIDDEN), jnp.float32),
        "ln2_g": jnp.ones((NUM_LAYERS, 1, HIDDEN), jnp.float32),
        "ln2_b": jnp.zeros((NUM_LAYERS, 1, HIDDEN), jnp.float32),
    })
    return params


# ---------------- forward (== EmbeddingModel.forward -> bert(**xb)[0]) ----------------
def embedding_model_forward(params, input_ids, token_type_ids, attention_mask):
    B, S = input_ids.shape
    # Embedding gathers are data-dependent lookups -> plain-JAX glue (XLA gather).
    x = (jnp.take(params["word_emb"], input_ids, axis=0)
         + params["pos_emb"][None, :S, :]
         + jnp.take(params["type_emb"], token_type_ids, axis=0)).reshape(B * S, HIDDEN)
    mask_add = ((1.0 - attention_mask.astype(jnp.float32)) * -10000.0).reshape(B, 1, S)
    out = fused_encoder(x, mask_add, params, B, S)
    return out.reshape(B, S, HIDDEN)  # last_hidden_state == bert(**xb)[0]


# ---------------- pure-JAX reference for verification ----------------
def reference_forward(params, input_ids, token_type_ids, attention_mask):
    def ln(x, g, b):
        mu = jnp.mean(x, -1, keepdims=True)
        var = jnp.mean((x - mu) ** 2, -1, keepdims=True)
        return (x - mu) / jnp.sqrt(var + LN_EPS) * g + b

    B, S = input_ids.shape
    x = (params["word_emb"][input_ids] + params["pos_emb"][None, :S]
         + params["type_emb"][token_type_ids])
    x = ln(x, params["emb_ln_g"][0], params["emb_ln_b"][0])
    mask_add = ((1.0 - attention_mask.astype(jnp.float32)) * -10000.0)[:, None, None, :]

    for l in range(NUM_LAYERS):
        qkv = x @ params["qkv_w"][l] + params["qkv_b"][l][0]
        q, k, v = jnp.split(qkv, 3, axis=-1)

        def heads(t):
            return t.reshape(B, S, NUM_HEADS, HEAD_DIM).transpose(0, 2, 1, 3)

        q, k, v = heads(q), heads(k), heads(v)
        s = jnp.einsum("bhqd,bhkd->bhqk", q, k) / math.sqrt(HEAD_DIM) + mask_add
        p = jax.nn.softmax(s, axis=-1)
        ctx = jnp.einsum("bhqk,bhkd->bhqd", p, v).transpose(0, 2, 1, 3).reshape(B, S, HIDDEN)
        x = ln(x + ctx @ params["o_w"][l] + params["o_b"][l][0],
               params["ln1_g"][l][0], params["ln1_b"][l][0])
        h = _gelu(x @ params["f1_w"][l] + params["f1_b"][l][0])
        x = ln(x + h @ params["f2_w"][l] + params["f2_b"][l][0],
               params["ln2_g"][l][0], params["ln2_b"][l][0])
    return x


if __name__ == "__main__":
    B, S = 2, 8
    key = jax.random.PRNGKey(0)
    pkey, ikey = jax.random.split(key)
    params = init_params(pkey)

    input_ids = jax.random.randint(ikey, (B, S), 0, VOCAB, dtype=jnp.int32)
    token_type_ids = jnp.zeros((B, S), jnp.int32)
    attention_mask = jnp.ones((B, S), jnp.int32).at[1, S - 2:].set(0)  # pad last 2 of batch 1

    out = embedding_model_forward(params, input_ids, token_type_ids, attention_mask)
    out = jax.block_until_ready(out)

    ref = reference_forward(params, input_ids, token_type_ids, attention_mask)
    assert out.shape == (B, S, HIDDEN)
    # 1e-3 tolerance: approx EUP reciprocal in the softmax denominator vs exact
    # division in the reference (effect here is << 1e-3 given the small weights).
    assert jnp.allclose(out, ref, rtol=1e-3, atol=1e-3), "mismatch vs pure-JAX reference"

    print("KERNEL_OK")
</pallas_src>

<mosaic_0001>
module attributes {stable_mosaic.version = 11 : i64} {
  func.func @_encoder_kernel(%arg0: i32, %arg1: memref<8x32xf32, #tpu.memory_space<vmem>>, %arg2: memref<1x1x8xf32, #tpu.memory_space<vmem>>, %arg3: memref<1x32xf32, #tpu.memory_space<vmem>>, %arg4: memref<1x32xf32, #tpu.memory_space<vmem>>, %arg5: memref<2x32x96xf32, #tpu.memory_space<vmem>>, %arg6: memref<2x1x96xf32, #tpu.memory_space<vmem>>, %arg7: memref<2x32x32xf32, #tpu.memory_space<vmem>>, %arg8: memref<2x1x32xf32, #tpu.memory_space<vmem>>, %arg9: memref<2x1x32xf32, #tpu.memory_space<vmem>>, %arg10: memref<2x1x32xf32, #tpu.memory_space<vmem>>, %arg11: memref<2x32x64xf32, #tpu.memory_space<vmem>>, %arg12: memref<2x1x64xf32, #tpu.memory_space<vmem>>, %arg13: memref<2x64x32xf32, #tpu.memory_space<vmem>>, %arg14: memref<2x1x32xf32, #tpu.memory_space<vmem>>, %arg15: memref<2x1x32xf32, #tpu.memory_space<vmem>>, %arg16: memref<2x1x32xf32, #tpu.memory_space<vmem>>, %arg17: memref<8x32xf32, #tpu.memory_space<vmem>>) attributes {dimension_semantics = [#tpu.dimension_semantics<parallel>], iteration_bounds = array<i64: 2>, scalar_prefetch = 0 : i64, scratch_operands = 0 : i64, tpu.core_type = #tpu.core_type<tc>, window_params = [{transform_indices = @transform_0, window_bounds = array<i64: 8, 32>}, {transform_indices = @transform_1, window_bounds = array<i64: 1, 1, 8>}, {pipeline_mode = #tpu.pipeline_mode<synchronous>, transform_indices = @transform_2, window_bounds = array<i64: 1, 32>}, {pipeline_mode = #tpu.pipeline_mode<synchronous>, transform_indices = @transform_3, window_bounds = array<i64: 1, 32>}, {pipeline_mode = #tpu.pipeline_mode<synchronous>, transform_indices = @transform_4, window_bounds = array<i64: 2, 32, 96>}, {pipeline_mode = #tpu.pipeline_mode<synchronous>, transform_indices = @transform_5, window_bounds = array<i64: 2, 1, 96>}, {pipeline_mode = #tpu.pipeline_mode<synchronous>, transform_indices = @transform_6, window_bounds = array<i64: 2, 32, 32>}, {pipeline_mode = #tpu.pipeline_mode<synchronous>, transform_indices = @transform_7, window_bounds = array<i64: 2, 1, 32>}, {pipeline_mode = #tpu.pipeline_mode<synchronous>, transform_indices = @transform_8, window_bounds = array<i64: 2, 1, 32>}, {pipeline_mode = #tpu.pipeline_mode<synchronous>, transform_indices = @transform_9, window_bounds = array<i64: 2, 1, 32>}, {pipeline_mode = #tpu.pipeline_mode<synchronous>, transform_indices = @transform_10, window_bounds = array<i64: 2, 32, 64>}, {pipeline_mode = #tpu.pipeline_mode<synchronous>, transform_indices = @transform_11, window_bounds = array<i64: 2, 1, 64>}, {pipeline_mode = #tpu.pipeline_mode<synchronous>, transform_indices = @transform_12, window_bounds = array<i64: 2, 64, 32>}, {pipeline_mode = #tpu.pipeline_mode<synchronous>, transform_indices = @transform_13, window_bounds = array<i64: 2, 1, 32>}, {pipeline_mode = #tpu.pipeline_mode<synchronous>, transform_indices = @transform_14, window_bounds = array<i64: 2, 1, 32>}, {pipeline_mode = #tpu.pipeline_mode<synchronous>, transform_indices = @transform_15, window_bounds = array<i64: 2, 1, 32>}, {transform_indices = @transform_16, window_bounds = array<i64: 8, 32>}]} {
    %c0 = arith.constant 0 : index
    %c0_0 = arith.constant 0 : index
    %c0_1 = arith.constant 0 : index
    %0 = vector.load %arg2[%c0, %c0_0, %c0_1] : memref<1x1x8xf32, #tpu.memory_space<vmem>>, vector<1x1x8xf32>
    %1 = vector.shape_cast %0 : vector<1x1x8xf32> to vector<1x8xf32>
    %c0_2 = arith.constant 0 : index
    %c0_3 = arith.constant 0 : index
    %2 = vector.load %arg1[%c0_2, %c0_3] : memref<8x32xf32, #tpu.memory_space<vmem>>, vector<8x32xf32>
    %c0_4 = arith.constant 0 : index
    %c0_5 = arith.constant 0 : index
    %3 = vector.load %arg3[%c0_4, %c0_5] : memref<1x32xf32, #tpu.memory_space<vmem>>, vector<1x32xf32>
    %c0_6 = arith.constant 0 : index
    %c0_7 = arith.constant 0 : index
    %4 = vector.load %arg4[%c0_6, %c0_7] : memref<1x32xf32, #tpu.memory_space<vmem>>, vector<1x32xf32>
    %cst = arith.constant dense<0.000000e+00> : vector<8xf32>
    %5 = vector.multi_reduction <add>, %2, %cst [1] : vector<8x32xf32> to vector<8xf32>
    %6 = vector.shape_cast %5 : vector<8xf32> to vector<8x1xf32>
    %cst_8 = arith.constant 3.200000e+01 : f32
    %7 = vector.broadcast %cst_8 : f32 to vector<8x1xf32>
    %8 = arith.divf %6, %7 : vector<8x1xf32>
    %9 = vector.broadcast %8 : vector<8x1xf32> to vector<8x32xf32>
    %10 = arith.subf %2, %9 : vector<8x32xf32>
    %11 = arith.mulf %10, %10 : vector<8x32xf32>
    %cst_9 = arith.constant dense<0.000000e+00> : vector<8xf32>
    %12 = vector.multi_reduction <add>, %11, %cst_9 [1] : vector<8x32xf32> to vector<8xf32>
    %13 = vector.shape_cast %12 : vector<8xf32> to vector<8x1xf32>
    %cst_10 = arith.constant 3.200000e+01 : f32
    %14 = vector.broadcast %cst_10 : f32 to vector<8x1xf32>
    %15 = arith.divf %13, %14 : vector<8x1xf32>
    %cst_11 = arith.constant 9.99999996E-13 : f32
    %16 = vector.broadcast %cst_11 : f32 to vector<8x1xf32>
    %17 = arith.addf %15, %16 : vector<8x1xf32>
    %18 = math.rsqrt %17 : vector<8x1xf32>
    %19 = vector.broadcast %18 : vector<8x1xf32> to vector<8x32xf32>
    %20 = arith.mulf %10, %19 : vector<8x32xf32>
    %21 = vector.broadcast %3 : vector<1x32xf32> to vector<8x32xf32>
    %22 = arith.mulf %20, %21 : vector<8x32xf32>
    %23 = vector.broadcast %4 : vector<1x32xf32> to vector<8x32xf32>
    %24 = arith.addf %22, %23 : vector<8x32xf32>
    %c0_12 = arith.constant 0 : index
    %c0_13 = arith.constant 0 : index
    %c0_14 = arith.constant 0 : index
    %25 = vector.load %arg5[%c0_12, %c0_13, %c0_14] : memref<2x32x96xf32, #tpu.memory_space<vmem>>, vector<1x32x96xf32>
    %26 = vector.shape_cast %25 : vector<1x32x96xf32> to vector<32x96xf32>
    %cst_15 = arith.constant dense<0.000000e+00> : vector<8x96xf32>
    %27 = tpu.matmul %24, %26, %cst_15 {dimension_numbers = #tpu.dot_dimension_numbers<[1], [0], [0], [1], [0, 0, 1, 1], [], []>} : vector<8x32xf32>, vector<32x96xf32>, vector<8x96xf32> -> vector<8x96xf32>
    %c0_16 = arith.constant 0 : index
    %c0_17 = arith.constant 0 : index
    %c0_18 = arith.constant 0 : index
    %28 = vector.load %arg6[%c0_16, %c0_17, %c0_18] : memref<2x1x96xf32, #tpu.memory_space<vmem>>, vector<1x1x96xf32>
    %29 = vector.shape_cast %28 : vector<1x1x96xf32> to vector<1x96xf32>
    %30 = vector.broadcast %29 : vector<1x96xf32> to vector<8x96xf32>
    %31 = arith.addf %27, %30 : vector<8x96xf32>
    %c0_19 = arith.constant 0 : index
    %c0_20 = arith.constant 0 : index
    %c0_21 = arith.constant 0 : index
    %32 = vector.load %arg7[%c0_19, %c0_20, %c0_21] : memref<2x32x32xf32, #tpu.memory_space<vmem>>, vector<1x32x32xf32>
    %33 = vector.shape_cast %32 : vector<1x32x32xf32> to vector<32x32xf32>
    %c0_22 = arith.constant 0 : index
    %c0_23 = arith.constant 0 : index
    %c0_24 = arith.constant 0 : index
    %34 = vector.load %arg8[%c0_22, %c0_23, %c0_24] : memref<2x1x32xf32, #tpu.memory_space<vmem>>, vector<1x1x32xf32>
    %35 = vector.shape_cast %34 : vector<1x1x32xf32> to vector<1x32xf32>
    %36 = vector.extract_strided_slice %31 {offsets = [0, 0], sizes = [8, 16], strides = [1, 1]} : vector<8x96xf32> to vector<8x16xf32>
    %37 = vector.extract_strided_slice %31 {offsets = [0, 32], sizes = [8, 16], strides = [1, 1]} : vector<8x96xf32> to vector<8x16xf32>
    %38 = vector.extract_strided_slice %31 {offsets = [0, 64], sizes = [8, 16], strides = [1, 1]} : vector<8x96xf32> to vector<8x16xf32>
    %cst_25 = arith.constant dense<0.000000e+00> : vector<8x8xf32>
    %39 = tpu.matmul %36, %37, %cst_25 {dimension_numbers = #tpu.dot_dimension_numbers<[1], [1], [0], [0], [0, 0, 1, 0], [], []>} : vector<8x16xf32>, vector<8x16xf32>, vector<8x8xf32> -> vector<8x8xf32>
    %cst_26 = arith.constant 2.500000e-01 : f32
    %40 = vector.broadcast %cst_26 : f32 to vector<8x8xf32>
    %41 = arith.mulf %39, %40 : vector<8x8xf32>
    %42 = vector.broadcast %1 : vector<1x8xf32> to vector<8x8xf32>
    %43 = arith.addf %41, %42 : vector<8x8xf32>
    %cst_27 = arith.constant dense<0xFF800000> : vector<8xf32>
    %44 = vector.multi_reduction <maximumf>, %43, %cst_27 [1] : vector<8x8xf32> to vector<8xf32>
    %45 = vector.shape_cast %44 : vector<8xf32> to vector<8x1xf32>
    %46 = vector.broadcast %45 : vector<8x1xf32> to vector<8x8xf32>
    %47 = arith.subf %43, %46 : vector<8x8xf32>
    %48 = math.exp %47 : vector<8x8xf32>
    %cst_28 = arith.constant dense<0.000000e+00> : vector<8xf32>
    %49 = vector.multi_reduction <add>, %48, %cst_28 [1] : vector<8x8xf32> to vector<8xf32>
    %50 = vector.shape_cast %49 : vector<8xf32> to vector<8x1xf32>
    %51 = tpu.reciprocal %50 {approx = true} : vector<8x1xf32> -> vector<8x1xf32>
    %52 = vector.broadcast %51 : vector<8x1xf32> to vector<8x8xf32>
    %53 = arith.mulf %48, %52 : vector<8x8xf32>
    %cst_29 = arith.constant dense<0.000000e+00> : vector<8x16xf32>
    %54 = tpu.matmul %53, %38, %cst_29 {dimension_numbers = #tpu.dot_dimension_numbers<[1], [0], [0], [1], [0, 0, 1, 1], [], []>} : vector<8x8xf32>, vector<8x16xf32>, vector<8x16xf32> -> vector<8x16xf32>
    %55 = vector.extract_strided_slice %33 {offsets = [0, 0], sizes = [16, 32], strides = [1, 1]} : vector<32x32xf32> to vector<16x32xf32>
    %cst_30 = arith.constant dense<0.000000e+00> : vector<8x32xf32>
    %56 = tpu.matmul %54, %55, %cst_30 {dimension_numbers = #tpu.dot_dimension_numbers<[1], [0], [0], [1], [0, 0, 1, 1], [], []>} : vector<8x16xf32>, vector<16x32xf32>, vector<8x32xf32> -> vector<8x32xf32>
    %57 = vector.broadcast %35 : vector<1x32xf32> to vector<8x32xf32>
    %58 = arith.addf %57, %56 : vector<8x32xf32>
    %59 = vector.extract_strided_slice %31 {offsets = [0, 16], sizes = [8, 16], strides = [1, 1]} : vector<8x96xf32> to vector<8x16xf32>
    %60 = vector.extract_strided_slice %31 {offsets = [0, 48], sizes = [8, 16], strides = [1, 1]} : vector<8x96xf32> to vector<8x16xf32>
    %61 = vector.extract_strided_slice %31 {offsets = [0, 80], sizes = [8, 16], strides = [1, 1]} : vector<8x96xf32> to vector<8x16xf32>
    %cst_31 = arith.constant dense<0.000000e+00> : vector<8x8xf32>
    %62 = tpu.matmul %59, %60, %cst_31 {dimension_numbers = #tpu.dot_dimension_numbers<[1], [1], [0], [0], [0, 0, 1, 0], [], []>} : vector<8x16xf32>, vector<8x16xf32>, vector<8x8xf32> -> vector<8x8xf32>
    %cst_32 = arith.constant 2.500000e-01 : f32
    %63 = vector.broadcast %cst_32 : f32 to vector<8x8xf32>
    %64 = arith.mulf %62, %63 : vector<8x8xf32>
    %65 = vector.broadcast %1 : vector<1x8xf32> to vector<8x8xf32>
    %66 = arith.addf %64, %65 : vector<8x8xf32>
    %cst_33 = arith.constant dense<0xFF800000> : vector<8xf32>
    %67 = vector.multi_reduction <maximumf>, %66, %cst_33 [1] : vector<8x8xf32> to vector<8xf32>
    %68 = vector.shape_cast %67 : vector<8xf32> to vector<8x1xf32>
    %69 = vector.broadcast %68 : vector<8x1xf32> to vector<8x8xf32>
    %70 = arith.subf %66, %69 : vector<8x8xf32>
    %71 = math.exp %70 : vector<8x8xf32>
    %cst_34 = arith.constant dense<0.000000e+00> : vector<8xf32>
    %72 = vector.multi_reduction <add>, %71, %cst_34 [1] : vector<8x8xf32> to vector<8xf32>
    %73 = vector.shape_cast %72 : vector<8xf32> to vector<8x1xf32>
    %74 = tpu.reciprocal %73 {approx = true} : vector<8x1xf32> -> vector<8x1xf32>
    %75 = vector.broadcast %74 : vector<8x1xf32> to vector<8x8xf32>
    %76 = arith.mulf %71, %75 : vector<8x8xf32>
    %cst_35 = arith.constant dense<0.000000e+00> : vector<8x16xf32>
    %77 = tpu.matmul %76, %61, %cst_35 {dimension_numbers = #tpu.dot_dimension_numbers<[1], [0], [0], [1], [0, 0, 1, 1], [], []>} : vector<8x8xf32>, vector<8x16xf32>, vector<8x16xf32> -> vector<8x16xf32>
    %78 = vector.extract_strided_slice %33 {offsets = [16, 0], sizes = [16, 32], strides = [1, 1]} : vector<32x32xf32> to vector<16x32xf32>
    %cst_36 = arith.constant dense<0.000000e+00> : vector<8x32xf32>
    %79 = tpu.matmul %77, %78, %cst_36 {dimension_numbers = #tpu.dot_dimension_numbers<[1], [0], [0], [1], [0, 0, 1, 1], [], []>} : vector<8x16xf32>, vector<16x32xf32>, vector<8x32xf32> -> vector<8x32xf32>
    %80 = arith.addf %58, %79 : vector<8x32xf32>
    %81 = arith.addf %24, %80 : vector<8x32xf32>
    %c0_37 = arith.constant 0 : index
    %c0_38 = arith.constant 0 : index
    %c0_39 = arith.constant 0 : index
    %82 = vector.load %arg9[%c0_37, %c0_38, %c0_39] : memref<2x1x32xf32, #tpu.memory_space<vmem>>, vector<1x1x32xf32>
    %83 = vector.shape_cast %82 : vector<1x1x32xf32> to vector<1x32xf32>
    %c0_40 = arith.constant 0 : index
    %c0_41 = arith.constant 0 : index
    %c0_42 = arith.constant 0 : index
    %84 = vector.load %arg10[%c0_40, %c0_41, %c0_42] : memref<2x1x32xf32, #tpu.memory_space<vmem>>, vector<1x1x32xf32>
    %85 = vector.shape_cast %84 : vector<1x1x32xf32> to vector<1x32xf32>
    %cst_43 = arith.constant dense<0.000000e+00> : vector<8xf32>
    %86 = vector.multi_reduction <add>, %81, %cst_43 [1] : vector<8x32xf32> to vector<8xf32>
    %87 = vector.shape_cast %86 : vector<8xf32> to vector<8x1xf32>
    %cst_44 = arith.constant 3.200000e+01 : f32
    %88 = vector.broadcast %cst_44 : f32 to vector<8x1xf32>
    %89 = arith.divf %87, %88 : vector<8x1xf32>
    %90 = vector.broadcast %89 : vector<8x1xf32> to vector<8x32xf32>
    %91 = arith.subf %81, %90 : vector<8x32xf32>
    %92 = arith.mulf %91, %91 : vector<8x32xf32>
    %cst_45 = arith.constant dense<0.000000e+00> : vector<8xf32>
    %93 = vector.multi_reduction <add>, %92, %cst_45 [1] : vector<8x32xf32> to vector<8xf32>
    %94 = vector.shape_cast %93 : vector<8xf32> to vector<8x1xf32>
    %cst_46 = arith.constant 3.200000e+01 : f32
    %95 = vector.broadcast %cst_46 : f32 to vector<8x1xf32>
    %96 = arith.divf %94, %95 : vector<8x1xf32>
    %cst_47 = arith.constant 9.99999996E-13 : f32
    %97 = vector.broadcast %cst_47 : f32 to vector<8x1xf32>
    %98 = arith.addf %96, %97 : vector<8x1xf32>
    %99 = math.rsqrt %98 : vector<8x1xf32>
    %100 = vector.broadcast %99 : vector<8x1xf32> to vector<8x32xf32>
    %101 = arith.mulf %91, %100 : vector<8x32xf32>
    %102 = vector.broadcast %83 : vector<1x32xf32> to vector<8x32xf32>
    %103 = arith.mulf %101, %102 : vector<8x32xf32>
    %104 = vector.broadcast %85 : vector<1x32xf32> to vector<8x32xf32>
    %105 = arith.addf %103, %104 : vector<8x32xf32>
    %c0_48 = arith.constant 0 : index
    %c0_49 = arith.constant 0 : index
    %c0_50 = arith.constant 0 : index
    %106 = vector.load %arg11[%c0_48, %c0_49, %c0_50] : memref<2x32x64xf32, #tpu.memory_space<vmem>>, vector<1x32x64xf32>
    %107 = vector.shape_cast %106 : vector<1x32x64xf32> to vector<32x64xf32>
    %cst_51 = arith.constant dense<0.000000e+00> : vector<8x64xf32>
    %108 = tpu.matmul %105, %107, %cst_51 {dimension_numbers = #tpu.dot_dimension_numbers<[1], [0], [0], [1], [0, 0, 1, 1], [], []>} : vector<8x32xf32>, vector<32x64xf32>, vector<8x64xf32> -> vector<8x64xf32>
    %c0_52 = arith.constant 0 : index
    %c0_53 = arith.constant 0 : index
    %c0_54 = arith.constant 0 : index
    %109 = vector.load %arg12[%c0_52, %c0_53, %c0_54] : memref<2x1x64xf32, #tpu.memory_space<vmem>>, vector<1x1x64xf32>
    %110 = vector.shape_cast %109 : vector<1x1x64xf32> to vector<1x64xf32>
    %111 = vector.broadcast %110 : vector<1x64xf32> to vector<8x64xf32>
    %112 = arith.addf %108, %111 : vector<8x64xf32>
    %cst_55 = arith.constant 5.000000e-01 : f32
    %113 = vector.broadcast %cst_55 : f32 to vector<8x64xf32>
    %114 = arith.mulf %113, %112 : vector<8x64xf32>
    %cst_56 = arith.constant 4.471500e-02 : f32
    %115 = vector.broadcast %cst_56 : f32 to vector<8x64xf32>
    %116 = arith.mulf %115, %112 : vector<8x64xf32>
    %117 = arith.mulf %116, %112 : vector<8x64xf32>
    %118 = arith.mulf %117, %112 : vector<8x64xf32>
    %119 = arith.addf %112, %118 : vector<8x64xf32>
    %cst_57 = arith.constant 0.797884583 : f32
    %120 = vector.broadcast %cst_57 : f32 to vector<8x64xf32>
    %121 = arith.mulf %120, %119 : vector<8x64xf32>
    %122 = math.tanh %121 : vector<8x64xf32>
    %cst_58 = arith.constant 1.000000e+00 : f32
    %123 = vector.broadcast %cst_58 : f32 to vector<8x64xf32>
    %124 = arith.addf %123, %122 : vector<8x64xf32>
    %125 = arith.mulf %114, %124 : vector<8x64xf32>
    %c0_59 = arith.constant 0 : index
    %c0_60 = arith.constant 0 : index
    %c0_61 = arith.constant 0 : index
    %126 = vector.load %arg13[%c0_59, %c0_60, %c0_61] : memref<2x64x32xf32, #tpu.memory_space<vmem>>, vector<1x64x32xf32>
    %127 = vector.shape_cast %126 : vector<1x64x32xf32> to vector<64x32xf32>
    %cst_62 = arith.constant dense<0.000000e+00> : vector<8x32xf32>
    %128 = tpu.matmul %125, %127, %cst_62 {dimension_numbers = #tpu.dot_dimension_numbers<[1], [0], [0], [1], [0, 0, 1, 1], [], []>} : vector<8x64xf32>, vector<64x32xf32>, vector<8x32xf32> -> vector<8x32xf32>
    %c0_63 = arith.constant 0 : index
    %c0_64 = arith.constant 0 : index
    %c0_65 = arith.constant 0 : index
    %129 = vector.load %arg14[%c0_63, %c0_64, %c0_65] : memref<2x1x32xf32, #tpu.memory_space<vmem>>, vector<1x1x32xf32>
    %130 = vector.shape_cast %129 : vector<1x1x32xf32> to vector<1x32xf32>
    %131 = vector.broadcast %130 : vector<1x32xf32> to vector<8x32xf32>
    %132 = arith.addf %128, %131 : vector<8x32xf32>
    %133 = arith.addf %105, %132 : vector<8x32xf32>
    %c0_66 = arith.constant 0 : index
    %c0_67 = arith.constant 0 : index
    %c0_68 = arith.constant 0 : index
    %134 = vector.load %arg15[%c0_66, %c0_67, %c0_68] : memref<2x1x32xf32, #tpu.memory_space<vmem>>, vector<1x1x32xf32>
    %135 = vector.shape_cast %134 : vector<1x1x32xf32> to vector<1x32xf32>
    %c0_69 = arith.constant 0 : index
    %c0_70 = arith.constant 0 : index
    %c0_71 = arith.constant 0 : index
    %136 = vector.load %arg16[%c0_69, %c0_70, %c0_71] : memref<2x1x32xf32, #tpu.memory_space<vmem>>, vector<1x1x32xf32>
    %137 = vector.shape_cast %136 : vector<1x1x32xf32> to vector<1x32xf32>
    %cst_72 = arith.constant dense<0.000000e+00> : vector<8xf32>
    %138 = vector.multi_reduction <add>, %133, %cst_72 [1] : vector<8x32xf32> to vector<8xf32>
    %139 = vector.shape_cast %138 : vector<8xf32> to vector<8x1xf32>
    %cst_73 = arith.constant 3.200000e+01 : f32
    %140 = vector.broadcast %cst_73 : f32 to vector<8x1xf32>
    %141 = arith.divf %139, %140 : vector<8x1xf32>
    %142 = vector.broadcast %141 : vector<8x1xf32> to vector<8x32xf32>
    %143 = arith.subf %133, %142 : vector<8x32xf32>
    %144 = arith.mulf %143, %143 : vector<8x32xf32>
    %cst_74 = arith.constant dense<0.000000e+00> : vector<8xf32>
    %145 = vector.multi_reduction <add>, %144, %cst_74 [1] : vector<8x32xf32> to vector<8xf32>
    %146 = vector.shape_cast %145 : vector<8xf32> to vector<8x1xf32>
    %cst_75 = arith.constant 3.200000e+01 : f32
    %147 = vector.broadcast %cst_75 : f32 to vector<8x1xf32>
    %148 = arith.divf %146, %147 : vector<8x1xf32>
    %cst_76 = arith.constant 9.99999996E-13 : f32
    %149 = vector.broadcast %cst_76 : f32 to vector<8x1xf32>
    %150 = arith.addf %148, %149 : vector<8x1xf32>
    %151 = math.rsqrt %150 : vector<8x1xf32>
    %152 = vector.broadcast %151 : vector<8x1xf32> to vector<8x32xf32>
    %153 = arith.mulf %143, %152 : vector<8x32xf32>
    %154 = vector.broadcast %135 : vector<1x32xf32> to vector<8x32xf32>
    %155 = arith.mulf %153, %154 : vector<8x32xf32>
    %156 = vector.broadcast %137 : vector<1x32xf32> to vector<8x32xf32>
    %157 = arith.addf %155, %156 : vector<8x32xf32>
    %c1 = arith.constant 1 : index
    %c0_77 = arith.constant 0 : index
    %c0_78 = arith.constant 0 : index
    %158 = vector.load %arg5[%c1, %c0_77, %c0_78] : memref<2x32x96xf32, #tpu.memory_space<vmem>>, vector<1x32x96xf32>
    %159 = vector.shape_cast %158 : vector<1x32x96xf32> to vector<32x96xf32>
    %cst_79 = arith.constant dense<0.000000e+00> : vector<8x96xf32>
    %160 = tpu.matmul %157, %159, %cst_79 {dimension_numbers = #tpu.dot_dimension_numbers<[1], [0], [0], [1], [0, 0, 1, 1], [], []>} : vector<8x32xf32>, vector<32x96xf32>, vector<8x96xf32> -> vector<8x96xf32>
    %c1_80 = arith.constant 1 : index
    %c0_81 = arith.constant 0 : index
    %c0_82 = arith.constant 0 : index
    %161 = vector.load %arg6[%c1_80, %c0_81, %c0_82] : memref<2x1x96xf32, #tpu.memory_space<vmem>>, vector<1x1x96xf32>
    %162 = vector.shape_cast %161 : vector<1x1x96xf32> to vector<1x96xf32>
    %163 = vector.broadcast %162 : vector<1x96xf32> to vector<8x96xf32>
    %164 = arith.addf %160, %163 : vector<8x96xf32>
    %c1_83 = arith.constant 1 : index
    %c0_84 = arith.constant 0 : index
    %c0_85 = arith.constant 0 : index
    %165 = vector.load %arg7[%c1_83, %c0_84, %c0_85] : memref<2x32x32xf32, #tpu.memory_space<vmem>>, vector<1x32x32xf32>
    %166 = vector.shape_cast %165 : vector<1x32x32xf32> to vector<32x32xf32>
    %c1_86 = arith.constant 1 : index
    %c0_87 = arith.constant 0 : index
    %c0_88 = arith.constant 0 : index
    %167 = vector.load %arg8[%c1_86, %c0_87, %c0_88] : memref<2x1x32xf32, #tpu.memory_space<vmem>>, vector<1x1x32xf32>
    %168 = vector.shape_cast %167 : vector<1x1x32xf32> to vector<1x32xf32>
    %169 = vector.extract_strided_slice %164 {offsets = [0, 0], sizes = [8, 16], strides = [1, 1]} : vector<8x96xf32> to vector<8x16xf32>
    %170 = vector.extract_strided_slice %164 {offsets = [0, 32], sizes = [8, 16], strides = [1, 1]} : vector<8x96xf32> to vector<8x16xf32>
    %171 = vector.extract_strided_slice %164 {offsets = [0, 64], sizes = [8, 16], strides = [1, 1]} : vector<8x96xf32> to vector<8x16xf32>
    %cst_89 = arith.constant dense<0.000000e+00> : vector<8x8xf32>
    %172 = tpu.matmul %169, %170, %cst_89 {dimension_numbers = #tpu.dot_dimension_numbers<[1], [1], [0], [0], [0, 0, 1, 0], [], []>} : vector<8x16xf32>, vector<8x16xf32>, vector<8x8xf32> -> vector<8x8xf32>
    %cst_90 = arith.constant 2.500000e-01 : f32
    %173 = vector.broadcast %cst_90 : f32 to vector<8x8xf32>
    %174 = arith.mulf %172, %173 : vector<8x8xf32>
    %175 = vector.broadcast %1 : vector<1x8xf32> to vector<8x8xf32>
    %176 = arith.addf %174, %175 : vector<8x8xf32>
    %cst_91 = arith.constant dense<0xFF800000> : vector<8xf32>
    %177 = vector.multi_reduction <maximumf>, %176, %cst_91 [1] : vector<8x8xf32> to vector<8xf32>
    %178 = vector.shape_cast %177 : vector<8xf32> to vector<8x1xf32>
    %179 = vector.broadcast %178 : vector<8x1xf32> to vector<8x8xf32>
    %180 = arith.subf %176, %179 : vector<8x8xf32>
    %181 = math.exp %180 : vector<8x8xf32>
    %cst_92 = arith.constant dense<0.000000e+00> : vector<8xf32>
    %182 = vector.multi_reduction <add>, %181, %cst_92 [1] : vector<8x8xf32> to vector<8xf32>
    %183 = vector.shape_cast %182 : vector<8xf32> to vector<8x1xf32>
    %184 = tpu.reciprocal %183 {approx = true} : vector<8x1xf32> -> vector<8x1xf32>
    %185 = vector.broadcast %184 : vector<8x1xf32> to vector<8x8xf32>
    %186 = arith.mulf %181, %185 : vector<8x8xf32>
    %cst_93 = arith.constant dense<0.000000e+00> : vector<8x16xf32>
    %187 = tpu.matmul %186, %171, %cst_93 {dimension_numbers = #tpu.dot_dimension_numbers<[1], [0], [0], [1], [0, 0, 1, 1], [], []>} : vector<8x8xf32>, vector<8x16xf32>, vector<8x16xf32> -> vector<8x16xf32>
    %188 = vector.extract_strided_slice %166 {offsets = [0, 0], sizes = [16, 32], strides = [1, 1]} : vector<32x32xf32> to vector<16x32xf32>
    %cst_94 = arith.constant dense<0.000000e+00> : vector<8x32xf32>
    %189 = tpu.matmul %187, %188, %cst_94 {dimension_numbers = #tpu.dot_dimension_numbers<[1], [0], [0], [1], [0, 0, 1, 1], [], []>} : vector<8x16xf32>, vector<16x32xf32>, vector<8x32xf32> -> vector<8x32xf32>
    %190 = vector.broadcast %168 : vector<1x32xf32> to vector<8x32xf32>
    %191 = arith.addf %190, %189 : vector<8x32xf32>
    %192 = vector.extract_strided_slice %164 {offsets = [0, 16], sizes = [8, 16], strides = [1, 1]} : vector<8x96xf32> to vector<8x16xf32>
    %193 = vector.extract_strided_slice %164 {offsets = [0, 48], sizes = [8, 16], strides = [1, 1]} : vector<8x96xf32> to vector<8x16xf32>
    %194 = vector.extract_strided_slice %164 {offsets = [0, 80], sizes = [8, 16], strides = [1, 1]} : vector<8x96xf32> to vector<8x16xf32>
    %cst_95 = arith.constant dense<0.000000e+00> : vector<8x8xf32>
    %195 = tpu.matmul %192, %193, %cst_95 {dimension_numbers = #tpu.dot_dimension_numbers<[1], [1], [0], [0], [0, 0, 1, 0], [], []>} : vector<8x16xf32>, vector<8x16xf32>, vector<8x8xf32> -> vector<8x8xf32>
    %cst_96 = arith.constant 2.500000e-01 : f32
    %196 = vector.broadcast %cst_96 : f32 to vector<8x8xf32>
    %197 = arith.mulf %195, %196 : vector<8x8xf32>
    %198 = vector.broadcast %1 : vector<1x8xf32> to vector<8x8xf32>
    %199 = arith.addf %197, %198 : vector<8x8xf32>
    %cst_97 = arith.constant dense<0xFF800000> : vector<8xf32>
    %200 = vector.multi_reduction <maximumf>, %199, %cst_97 [1] : vector<8x8xf32> to vector<8xf32>
    %201 = vector.shape_cast %200 : vector<8xf32> to vector<8x1xf32>
    %202 = vector.broadcast %201 : vector<8x1xf32> to vector<8x8xf32>
    %203 = arith.subf %199, %202 : vector<8x8xf32>
    %204 = math.exp %203 : vector<8x8xf32>
    %cst_98 = arith.constant dense<0.000000e+00> : vector<8xf32>
    %205 = vector.multi_reduction <add>, %204, %cst_98 [1] : vector<8x8xf32> to vector<8xf32>
    %206 = vector.shape_cast %205 : vector<8xf32> to vector<8x1xf32>
    %207 = tpu.reciprocal %206 {approx = true} : vector<8x1xf32> -> vector<8x1xf32>
    %208 = vector.broadcast %207 : vector<8x1xf32> to vector<8x8xf32>
    %209 = arith.mulf %204, %208 : vector<8x8xf32>
    %cst_99 = arith.constant dense<0.000000e+00> : vector<8x16xf32>
    %210 = tpu.matmul %209, %194, %cst_99 {dimension_numbers = #tpu.dot_dimension_numbers<[1], [0], [0], [1], [0, 0, 1, 1], [], []>} : vector<8x8xf32>, vector<8x16xf32>, vector<8x16xf32> -> vector<8x16xf32>
    %211 = vector.extract_strided_slice %166 {offsets = [16, 0], sizes = [16, 32], strides = [1, 1]} : vector<32x32xf32> to vector<16x32xf32>
    %cst_100 = arith.constant dense<0.000000e+00> : vector<8x32xf32>
    %212 = tpu.matmul %210, %211, %cst_100 {dimension_numbers = #tpu.dot_dimension_numbers<[1], [0], [0], [1], [0, 0, 1, 1], [], []>} : vector<8x16xf32>, vector<16x32xf32>, vector<8x32xf32> -> vector<8x32xf32>
    %213 = arith.addf %191, %212 : vector<8x32xf32>
    %214 = arith.addf %157, %213 : vector<8x32xf32>
    %c1_101 = arith.constant 1 : index
    %c0_102 = arith.constant 0 : index
    %c0_103 = arith.constant 0 : index
    %215 = vector.load %arg9[%c1_101, %c0_102, %c0_103] : memref<2x1x32xf32, #tpu.memory_space<vmem>>, vector<1x1x32xf32>
    %216 = vector.shape_cast %215 : vector<1x1x32xf32> to vector<1x32xf32>
    %c1_104 = arith.constant 1 : index
    %c0_105 = arith.constant 0 : index
    %c0_106 = arith.constant 0 : index
    %217 = vector.load %arg10[%c1_104, %c0_105, %c0_106] : memref<2x1x32xf32, #tpu.memory_space<vmem>>, vector<1x1x32xf32>
    %218 = vector.shape_cast %217 : vector<1x1x32xf32> to vector<1x32xf32>
    %cst_107 = arith.constant dense<0.000000e+00> : vector<8xf32>
    %219 = vector.multi_reduction <add>, %214, %cst_107 [1] : vector<8x32xf32> to vector<8xf32>
    %220 = vector.shape_cast %219 : vector<8xf32> to vector<8x1xf32>
    %cst_108 = arith.constant 3.200000e+01 : f32
    %221 = vector.broadcast %cst_108 : f32 to vector<8x1xf32>
    %222 = arith.divf %220, %221 : vector<8x1xf32>
    %223 = vector.broadcast %222 : vector<8x1xf32> to vector<8x32xf32>
    %224 = arith.subf %214, %223 : vector<8x32xf32>
    %225 = arith.mulf %224, %224 : vector<8x32xf32>
    %cst_109 = arith.constant dense<0.000000e+00> : vector<8xf32>
    %226 = vector.multi_reduction <add>, %225, %cst_109 [1] : vector<8x32xf32> to vector<8xf32>
    %227 = vector.shape_cast %226 : vector<8xf32> to vector<8x1xf32>
    %cst_110 = arith.constant 3.200000e+01 : f32
    %228 = vector.broadcast %cst_110 : f32 to vector<8x1xf32>
    %229 = arith.divf %227, %228 : vector<8x1xf32>
    %cst_111 = arith.constant 9.99999996E-13 : f32
    %230 = vector.broadcast %cst_111 : f32 to vector<8x1xf32>
    %231 = arith.addf %229, %230 : vector<8x1xf32>
    %232 = math.rsqrt %231 : vector<8x1xf32>
    %233 = vector.broadcast %232 : vector<8x1xf32> to vector<8x32xf32>
    %234 = arith.mulf %224, %233 : vector<8x32xf32>
    %235 = vector.broadcast %216 : vector<1x32xf32> to vector<8x32xf32>
    %236 = arith.mulf %234, %235 : vector<8x32xf32>
    %237 = vector.broadcast %218 : vector<1x32xf32> to vector<8x32xf32>
    %238 = arith.addf %236, %237 : vector<8x32xf32>
    %c1_112 = arith.constant 1 : index
    %c0_113 = arith.constant 0 : index
    %c0_114 = arith.constant 0 : index
    %239 = vector.load %arg11[%c1_112, %c0_113, %c0_114] : memref<2x32x64xf32, #tpu.memory_space<vmem>>, vector<1x32x64xf32>
    %240 = vector.shape_cast %239 : vector<1x32x64xf32> to vector<32x64xf32>
    %cst_115 = arith.constant dense<0.000000e+00> : vector<8x64xf32>
    %241 = tpu.matmul %238, %240, %cst_115 {dimension_numbers = #tpu.dot_dimension_numbers<[1], [0], [0], [1], [0, 0, 1, 1], [], []>} : vector<8x32xf32>, vector<32x64xf32>, vector<8x64xf32> -> vector<8x64xf32>
    %c1_116 = arith.constant 1 : index
    %c0_117 = arith.constant 0 : index
    %c0_118 = arith.constant 0 : index
    %242 = vector.load %arg12[%c1_116, %c0_117, %c0_118] : memref<2x1x64xf32, #tpu.memory_space<vmem>>, vector<1x1x64xf32>
    %243 = vector.shape_cast %242 : vector<1x1x64xf32> to vector<1x64xf32>
    %244 = vector.broadcast %243 : vector<1x64xf32> to vector<8x64xf32>
    %245 = arith.addf %241, %244 : vector<8x64xf32>
    %cst_119 = arith.constant 5.000000e-01 : f32
    %246 = vector.broadcast %cst_119 : f32 to vector<8x64xf32>
    %247 = arith.mulf %246, %245 : vector<8x64xf32>
    %cst_120 = arith.constant 4.471500e-02 : f32
    %248 = vector.broadcast %cst_120 : f32 to vector<8x64xf32>
    %249 = arith.mulf %248, %245 : vector<8x64xf32>
    %250 = arith.mulf %249, %245 : vector<8x64xf32>
    %251 = arith.mulf %250, %245 : vector<8x64xf32>
    %252 = arith.addf %245, %251 : vector<8x64xf32>
    %cst_121 = arith.constant 0.797884583 : f32
    %253 = vector.broadcast %cst_121 : f32 to vector<8x64xf32>
    %254 = arith.mulf %253, %252 : vector<8x64xf32>
    %255 = math.tanh %254 : vector<8x64xf32>
    %cst_122 = arith.constant 1.000000e+00 : f32
    %256 = vector.broadcast %cst_122 : f32 to vector<8x64xf32>
    %257 = arith.addf %256, %255 : vector<8x64xf32>
    %258 = arith.mulf %247, %257 : vector<8x64xf32>
    %c1_123 = arith.constant 1 : index
    %c0_124 = arith.constant 0 : index
    %c0_125 = arith.constant 0 : index
    %259 = vector.load %arg13[%c1_123, %c0_124, %c0_125] : memref<2x64x32xf32, #tpu.memory_space<vmem>>, vector<1x64x32xf32>
    %260 = vector.shape_cast %259 : vector<1x64x32xf32> to vector<64x32xf32>
    %cst_126 = arith.constant dense<0.000000e+00> : vector<8x32xf32>
    %261 = tpu.matmul %258, %260, %cst_126 {dimension_numbers = #tpu.dot_dimension_numbers<[1], [0], [0], [1], [0, 0, 1, 1], [], []>} : vector<8x64xf32>, vector<64x32xf32>, vector<8x32xf32> -> vector<8x32xf32>
    %c1_127 = arith.constant 1 : index
    %c0_128 = arith.constant 0 : index
    %c0_129 = arith.constant 0 : index
    %262 = vector.load %arg14[%c1_127, %c0_128, %c0_129] : memref<2x1x32xf32, #tpu.memory_space<vmem>>, vector<1x1x32xf32>
    %263 = vector.shape_cast %262 : vector<1x1x32xf32> to vector<1x32xf32>
    %264 = vector.broadcast %263 : vector<1x32xf32> to vector<8x32xf32>
    %265 = arith.addf %261, %264 : vector<8x32xf32>
    %266 = arith.addf %238, %265 : vector<8x32xf32>
    %c1_130 = arith.constant 1 : index
    %c0_131 = arith.constant 0 : index
    %c0_132 = arith.constant 0 : index
    %267 = vector.load %arg15[%c1_130, %c0_131, %c0_132] : memref<2x1x32xf32, #tpu.memory_space<vmem>>, vector<1x1x32xf32>
    %268 = vector.shape_cast %267 : vector<1x1x32xf32> to vector<1x32xf32>
    %c1_133 = arith.constant 1 : index
    %c0_134 = arith.constant 0 : index
    %c0_135 = arith.constant 0 : index
    %269 = vector.load %arg16[%c1_133, %c0_134, %c0_135] : memref<2x1x32xf32, #tpu.memory_space<vmem>>, vector<1x1x32xf32>
    %270 = vector.shape_cast %269 : vector<1x1x32xf32> to vector<1x32xf32>
    %cst_136 = arith.constant dense<0.000000e+00> : vector<8xf32>
    %271 = vector.multi_reduction <add>, %266, %cst_136 [1] : vector<8x32xf32> to vector<8xf32>
    %272 = vector.shape_cast %271 : vector<8xf32> to vector<8x1xf32>
    %cst_137 = arith.constant 3.200000e+01 : f32
    %273 = vector.broadcast %cst_137 : f32 to vector<8x1xf32>
    %274 = arith.divf %272, %273 : vector<8x1xf32>
    %275 = vector.broadcast %274 : vector<8x1xf32> to vector<8x32xf32>
    %276 = arith.subf %266, %275 : vector<8x32xf32>
    %277 = arith.mulf %276, %276 : vector<8x32xf32>
    %cst_138 = arith.constant dense<0.000000e+00> : vector<8xf32>
    %278 = vector.multi_reduction <add>, %277, %cst_138 [1] : vector<8x32xf32> to vector<8xf32>
    %279 = vector.shape_cast %278 : vector<8xf32> to vector<8x1xf32>
    %cst_139 = arith.constant 3.200000e+01 : f32
    %280 = vector.broadcast %cst_139 : f32 to vector<8x1xf32>
    %281 = arith.divf %279, %280 : vector<8x1xf32>
    %cst_140 = arith.constant 9.99999996E-13 : f32
    %282 = vector.broadcast %cst_140 : f32 to vector<8x1xf32>
    %283 = arith.addf %281, %282 : vector<8x1xf32>
    %284 = math.rsqrt %283 : vector<8x1xf32>
    %285 = vector.broadcast %284 : vector<8x1xf32> to vector<8x32xf32>
    %286 = arith.mulf %276, %285 : vector<8x32xf32>
    %287 = vector.broadcast %268 : vector<1x32xf32> to vector<8x32xf32>
    %288 = arith.mulf %286, %287 : vector<8x32xf32>
    %289 = vector.broadcast %270 : vector<1x32xf32> to vector<8x32xf32>
    %290 = arith.addf %288, %289 : vector<8x32xf32>
    %c0_141 = arith.constant 0 : index
    %c0_142 = arith.constant 0 : index
    %291 = vector.load %arg17[%c0_141, %c0_142] : memref<8x32xf32, #tpu.memory_space<vmem>>, vector<8x32xf32>
    tpu.vector_store %arg17[%c0_141, %c0_142], %290 {strides = array<i32>} : memref<8x32xf32, #tpu.memory_space<vmem>>, vector<8x32xf32>,
    return
  }
  func.func @transform_0(%arg0: i32) -> (i32, i32) {
    %c0_i32 = arith.constant 0 : i32
    %c0_i32_0 = arith.constant 0 : i32
    return %arg0, %c0_i32 : i32, i32
  }
  func.func @transform_1(%arg0: i32) -> (i32, i32, i32) {
    %c0_i32 = arith.constant 0 : i32
    %c0_i32_0 = arith.constant 0 : i32
    %c0_i32_1 = arith.constant 0 : i32
    return %arg0, %c0_i32, %c0_i32_0 : i32, i32, i32
  }
  func.func @transform_2(%arg0: i32) -> (i32, i32) {
    %c0_i32 = arith.constant 0 : i32
    %c0_i32_0 = arith.constant 0 : i32
    %c0_i32_1 = arith.constant 0 : i32
    return %c0_i32, %c0_i32_0 : i32, i32
  }
  func.func @transform_3(%arg0: i32) -> (i32, i32) {
    %c0_i32 = arith.constant 0 : i32
    %c0_i32_0 = arith.constant 0 : i32
    %c0_i32_1 = arith.constant 0 : i32
    return %c0_i32, %c0_i32_0 : i32, i32
  }
  func.func @transform_4(%arg0: i32) -> (i32, i32, i32) {
    %c0_i32 = arith.constant 0 : i32
    %c0_i32_0 = arith.constant 0 : i32
    %c0_i32_1 = arith.constant 0 : i32
    %c0_i32_2 = arith.constant 0 : i32
    return %c0_i32, %c0_i32_0, %c0_i32_1 : i32, i32, i32
  }
  func.func @transform_5(%arg0: i32) -> (i32, i32, i32) {
    %c0_i32 = arith.constant 0 : i32
    %c0_i32_0 = arith.constant 0 : i32
    %c0_i32_1 = arith.constant 0 : i32
    %c0_i32_2 = arith.constant 0 : i32
    return %c0_i32, %c0_i32_0, %c0_i32_1 : i32, i32, i32
  }
  func.func @transform_6(%arg0: i32) -> (i32, i32, i32) {
    %c0_i32 = arith.constant 0 : i32
    %c0_i32_0 = arith.constant 0 : i32
    %c0_i32_1 = arith.constant 0 : i32
    %c0_i32_2 = arith.constant 0 : i32
    return %c0_i32, %c0_i32_0, %c0_i32_1 : i32, i32, i32
  }
  func.func @transform_7(%arg0: i32) -> (i32, i32, i32) {
    %c0_i32 = arith.constant 0 : i32
    %c0_i32_0 = arith.constant 0 : i32
    %c0_i32_1 = arith.constant 0 : i32
    %c0_i32_2 = arith.constant 0 : i32
    return %c0_i32, %c0_i32_0, %c0_i32_1 : i32, i32, i32
  }
  func.func @transform_8(%arg0: i32) -> (i32, i32, i32) {
    %c0_i32 = arith.constant 0 : i32
    %c0_i32_0 = arith.constant 0 : i32
    %c0_i32_1 = arith.constant 0 : i32
    %c0_i32_2 = arith.constant 0 : i32
    return %c0_i32, %c0_i32_0, %c0_i32_1 : i32, i32, i32
  }
  func.func @transform_9(%arg0: i32) -> (i32, i32, i32) {
    %c0_i32 = arith.constant 0 : i32
    %c0_i32_0 = arith.constant 0 : i32
    %c0_i32_1 = arith.constant 0 : i32
    %c0_i32_2 = arith.constant 0 : i32
    return %c0_i32, %c0_i32_0, %c0_i32_1 : i32, i32, i32
  }
  func.func @transform_10(%arg0: i32) -> (i32, i32, i32) {
    %c0_i32 = arith.constant 0 : i32
    %c0_i32_0 = arith.constant 0 : i32
    %c0_i32_1 = arith.constant 0 : i32
    %c0_i32_2 = arith.constant 0 : i32
    return %c0_i32, %c0_i32_0, %c0_i32_1 : i32, i32, i32
  }
  func.func @transform_11(%arg0: i32) -> (i32, i32, i32) {
    %c0_i32 = arith.constant 0 : i32
    %c0_i32_0 = arith.constant 0 : i32
    %c0_i32_1 = arith.constant 0 : i32
    %c0_i32_2 = arith.constant 0 : i32
    return %c0_i32, %c0_i32_0, %c0_i32_1 : i32, i32, i32
  }
  func.func @transform_12(%arg0: i32) -> (i32, i32, i32) {
    %c0_i32 = arith.constant 0 : i32
    %c0_i32_0 = arith.constant 0 : i32
    %c0_i32_1 = arith.constant 0 : i32
    %c0_i32_2 = arith.constant 0 : i32
    return %c0_i32, %c0_i32_0, %c0_i32_1 : i32, i32, i32
  }
  func.func @transform_13(%arg0: i32) -> (i32, i32, i32) {
    %c0_i32 = arith.constant 0 : i32
    %c0_i32_0 = arith.constant 0 : i32
    %c0_i32_1 = arith.constant 0 : i32
    %c0_i32_2 = arith.constant 0 : i32
    return %c0_i32, %c0_i32_0, %c0_i32_1 : i32, i32, i32
  }
  func.func @transform_14(%arg0: i32) -> (i32, i32, i32) {
    %c0_i32 = arith.constant 0 : i32
    %c0_i32_0 = arith.constant 0 : i32
    %c0_i32_1 = arith.constant 0 : i32
    %c0_i32_2 = arith.constant 0 : i32
    return %c0_i32, %c0_i32_0, %c0_i32_1 : i32, i32, i32
  }
  func.func @transform_15(%arg0: i32) -> (i32, i32, i32) {
    %c0_i32 = arith.constant 0 : i32
    %c0_i32_0 = arith.constant 0 : i32
    %c0_i32_1 = arith.constant 0 : i32
    %c0_i32_2 = arith.constant 0 : i32
    return %c0_i32, %c0_i32_0, %c0_i32_1 : i32, i32, i32
  }
  func.func @transform_16(%arg0: i32) -> (i32, i32) {
    %c0_i32 = arith.constant 0 : i32
    %c0_i32_0 = arith.constant 0 : i32
    return %arg0, %c0_i32 : i32, i32
  }
}

</mosaic_0001>

<llo_original>
// kernel: tpu_custom_call.1
$region0: #{tpu_custom_call.1}
  #allocation0 [shape = 'u32[]', space=smem, size = 0x4, offset = 0x4, fixed_abs, tag = 'smem constant byte address 0x4 - core index']
  #allocation1 [shape = 'u32[72,128]{1,0:T(1,128)}', space=vmem, size = 0x9000, scoped, tag = 'internal scratch']
  %s0 = inlined_call_operand.hbm [shape: f32[16,32], index: 0, kind: input, shape index: {}]
  %s1 = inlined_call_operand.hbm [shape: f32[2,1,8], index: 1, kind: input, shape index: {}]
  %s2 = inlined_call_operand.hbm [shape: f32[1,32], index: 2, kind: input, shape index: {}]
  %s3 = inlined_call_operand.hbm [shape: f32[1,32], index: 3, kind: input, shape index: {}]
  %s4 = inlined_call_operand.vmem [shape: f32[2,32,96], index: 4, kind: input, shape index: {}]
  %s5 = inlined_call_operand.vmem [shape: f32[2,1,96], index: 5, kind: input, shape index: {}]
  %s6 = inlined_call_operand.vmem [shape: f32[2,32,32], index: 6, kind: input, shape index: {}]
  %s7 = inlined_call_operand.vmem [shape: f32[2,1,32], index: 7, kind: input, shape index: {}]
  %s8 = inlined_call_operand.hbm [shape: f32[2,1,32], index: 8, kind: input, shape index: {}]
  %s9 = inlined_call_operand.vmem [shape: f32[2,1,32], index: 9, kind: input, shape index: {}]
  %s10 = inlined_call_operand.vmem [shape: f32[2,32,64], index: 10, kind: input, shape index: {}]
  %s11 = inlined_call_operand.vmem [shape: f32[2,1,64], index: 11, kind: input, shape index: {}]
  %s12 = inlined_call_operand.vmem [shape: f32[2,64,32], index: 12, kind: input, shape index: {}]
  %s13 = inlined_call_operand.vmem [shape: f32[2,1,32], index: 13, kind: input, shape index: {}]
  %s14 = inlined_call_operand.hbm [shape: f32[2,1,32], index: 14, kind: input, shape index: {}]
  %s15 = inlined_call_operand.vmem [shape: f32[2,1,32], index: 15, kind: input, shape index: {}]
  %s16 = inlined_call_operand.hbm [shape: f32[16,32], index: 16, kind: output, shape index: {}]
  %s17 = sld [smem:[#allocation0]]
  $region121: #{tpu_custom_call.1} parent=0
    _
  %s19 = ssub.s32 1, %s17
  %s20 = scalar_select 0, %s19, %s17
  $region1: #{tpu_custom_call.1} parent=0
    #allocation2 [shape = 'u8[8192]{0}', space=vmem, size = 0x2000, scoped, tag = 'input window, operand 0']
    #allocation3 [shape = 's32[2]{0}', space=sflag, size = 0x8, scoped, tag = 'scoped memory for tpu_custom_call.1']
    #allocation4 [shape = 's32[2]{0}', space=sflag, size = 0x8, scoped, tag = 'scoped memory for tpu_custom_call.1']
    #allocation5 [shape = 'u8[1024]{0}', space=vmem, size = 0x400, scoped, tag = 'input window, operand 1']
    #allocation6 [shape = 's32[2]{0}', space=sflag, size = 0x8, scoped, tag = 'scoped memory for tpu_custom_call.1']
    #allocation7 [shape = 'u8[512]{0}', space=vmem, size = 0x400, scoped, tag = 'input window, operand 2, single buffered']
    #allocation8 [shape = 'u8[512]{0}', space=vmem, size = 0x400, scoped, tag = 'input window, operand 3, single buffered']
    #allocation9 [shape = 's32[1]{0}', space=sflag, size = 0x4, scoped, tag = 'scoped memory for tpu_custom_call.1']
    #allocation10 [shape = 'u8[1024]{0}', space=vmem, size = 0x400, scoped, tag = 'input window, operand 8, single buffered']
    #allocation11 [shape = 'u8[1024]{0}', space=vmem, size = 0x400, scoped, tag = 'input window, operand 14, single buffered']
    #allocation12 [shape = 's32[1]{0}', space=sflag, size = 0x4, scoped, tag = 'scoped memory for tpu_custom_call.1']
    #allocation13 [shape = 'u8[8192]{0}', space=vmem, size = 0x2000, scoped, tag = 'output window, operand 0']
    %21 = vsyncpa [#allocation3], 0
    %s22 = scalar_lea.sflag [#allocation3], 1
    %23 = vsyncpa %s22, 0
    %24 = vsyncpa [#allocation6], 0
    %s25 = scalar_lea.sflag [#allocation6], 1
    %26 = vsyncpa %s25, 0
    %27 = vsyncpa [#allocation9], 0
    %28 = vsyncpa [#allocation12], 0
    %29 = vsyncpa [#allocation4], 0
    %s30 = scalar_lea.sflag [#allocation4], 1
    %31 = vsyncpa %s30, 0
    loop: start=0, step=1, limit=4
    $region2: #{tpu_custom_call.1} parent=1 // loop_pre_header
      _
    $region3: #{tpu_custom_call.1} parent=1 // loop_header
      %s33 = sphi 0, %s37
      %p34 = scmp.ge.s32.totalorder %s33, 4
      %s43 = sphi 0, %s45
      %s46 = sphi 0, %s43
      %s47 = sphi 0, %s46
      %s63 = sphi 0, %s47
      %s69 = sphi 0, %s71
      %s72 = sphi 0, %s69
      %s73 = sphi 0, %s72
      %s89 = sphi 0, %s73
      %s93 = sphi 0, %s93
      %s95 = sphi 0, %s93
      %s96 = sphi 0, %s95
      %s110 = sphi 0, %s96
      %s114 = sphi 0, %s114
      %s116 = sphi 0, %s114
      %s117 = sphi 0, %s116
      %s131 = sphi 0, %s117
      %s135 = sphi 0, %s135
      %s137 = sphi 0, %s135
      %s138 = sphi 0, %s137
      %s152 = sphi 0, %s138
      %s156 = sphi 0, %s156
      %s158 = sphi 0, %s156
      %s159 = sphi 0, %s158
      %s173 = sphi 0, %s159
      %s177 = sphi 0, %s177
      %s179 = sphi 0, %s177
      %s180 = sphi 0, %s179
      %s194 = sphi 0, %s180
      %s198 = sphi 0, %s198
      %s200 = sphi 0, %s198
      %s201 = sphi 0, %s200
      %s215 = sphi 0, %s201
      %s219 = sphi 0, %s219
      %s221 = sphi 0, %s219
      %s222 = sphi 0, %s221
      %s236 = sphi 0, %s222
      %s240 = sphi 0, %s240
      %s242 = sphi 0, %s240
      %s243 = sphi 0, %s242
      %s257 = sphi 0, %s243
      %s261 = sphi 0, %s261
      %s263 = sphi 0, %s261
      %s264 = sphi 0, %s263
      %s278 = sphi 0, %s264
      %s282 = sphi 0, %s282
      %s284 = sphi 0, %s282
      %s285 = sphi 0, %s284
      %s299 = sphi 0, %s285
      %s303 = sphi 0, %s303
      %s305 = sphi 0, %s303
      %s306 = sphi 0, %s305
      %s320 = sphi 0, %s306
      %s324 = sphi 0, %s324
      %s326 = sphi 0, %s324
      %s327 = sphi 0, %s326
      %s341 = sphi 0, %s327
      %s345 = sphi 0, %s345
      %s347 = sphi 0, %s345
      %s348 = sphi 0, %s347
      %s362 = sphi 0, %s348
      %s366 = sphi 0, %s366
      %s368 = sphi 0, %s366
      %s369 = sphi 0, %s368
      %s383 = sphi 0, %s369
      %s389 = sphi 0, %s391
      %s392 = sphi 0, %s389
      %s393 = sphi 0, %s392
      %s409 = sphi 0, %s393
    $region4: #{tpu_custom_call.1} parent=1 // loop_header_branch
      %36 = sbr.rel (%p34) target = $region8
    $region5: #{tpu_custom_call.1} parent=1 // loop_body
      %s38 = ssub.s32 %s33, 1
      %s39 = ssub.s32 %s33, 2
      %s40 = sadd.s32 %s33, 1
      %s41 = ssub.s32 %s33, %s40
      %p42 = scmp.eq.s32.totalorder %s41, 0
      %s44 = sadd.s32 %s43, 1
      %s45 = scalar_select %p42, %s43, %s44
      %p48 = pneg %p42
      %p49 = scmp.eq.s32.totalorder %s33, 1
      %p50 = por %p48, %p49
      %p51 = scmp.ne.s32.totalorder %s43, %s46
      %p52 = scmp.eq.s32.totalorder %s33, 0
      %p53 = por %p51, %p52
      %p54 = scmp.ne.s32.totalorder %s43, %s46
      %p55 = scmp.eq.s32.totalorder %s38, 1
      %p56 = por %p54, %p55
      %p57 = scmp.ne.s32.totalorder %s46, %s47
      %p58 = scmp.eq.s32.totalorder %s38, 0
      %p59 = por %p57, %p58
      %p60 = scmp.ne.s32.totalorder %s46, %s47
      %p61 = scmp.eq.s32.totalorder %s39, 1
      %p62 = por %p60, %p61
      %p64 = scmp.ne.s32.totalorder %s47, %s63
      %p65 = scmp.eq.s32.totalorder %s39, 0
      %p66 = por %p64, %p65
      %s67 = ssub.s32 %s33, %s40
      %p68 = scmp.eq.s32.totalorder %s67, 0
      %s70 = sadd.s32 %s69, 1
      %s71 = scalar_select %p68, %s69, %s70
      %p74 = pneg %p68
      %p75 = scmp.eq.s32.totalorder %s33, 1
      %p76 = por %p74, %p75
      %p77 = scmp.ne.s32.totalorder %s69, %s72
      %p78 = scmp.eq.s32.totalorder %s33, 0
      %p79 = por %p77, %p78
      %p80 = scmp.ne.s32.totalorder %s69, %s72
      %p81 = scmp.eq.s32.totalorder %s38, 1
      %p82 = por %p80, %p81
      %p83 = scmp.ne.s32.totalorder %s72, %s73
      %p84 = scmp.eq.s32.totalorder %s38, 0
      %p85 = por %p83, %p84
      %p86 = scmp.ne.s32.totalorder %s72, %s73
      %p87 = scmp.eq.s32.totalorder %s39, 1
      %p88 = por %p86, %p87
      %p90 = scmp.ne.s32.totalorder %s73, %s89
      %p91 = scmp.eq.s32.totalorder %s39, 0
      %p92 = por %p90, %p91
      %s94 = sadd.s32 %s93, 1
      %p97 = scmp.eq.s32.totalorder %s33, 1
      %p98 = scmp.ne.s32.totalorder %s93, %s95
      %p99 = scmp.eq.s32.totalorder %s33, 0
      %p100 = por %p98, %p99
      %p101 = scmp.ne.s32.totalorder %s93, %s95
      %p102 = scmp.eq.s32.totalorder %s38, 1
      %p103 = por %p101, %p102
      %p104 = scmp.ne.s32.totalorder %s95, %s96
      %p105 = scmp.eq.s32.totalorder %s38, 0
      %p106 = por %p104, %p105
      %p107 = scmp.ne.s32.totalorder %s95, %s96
      %p108 = scmp.eq.s32.totalorder %s39, 1
      %p109 = por %p107, %p108
      %p111 = scmp.ne.s32.totalorder %s96, %s110
      %p112 = scmp.eq.s32.totalorder %s39, 0
      %p113 = por %p111, %p112
      %s115 = sadd.s32 %s114, 1
      %p118 = scmp.eq.s32.totalorder %s33, 1
      %p119 = scmp.ne.s32.totalorder %s114, %s116
      %p120 = scmp.eq.s32.totalorder %s33, 0
      %p121 = por %p119, %p120
      %p122 = scmp.ne.s32.totalorder %s114, %s116
      %p123 = scmp.eq.s32.totalorder %s38, 1
      %p124 = por %p122, %p123
      %p125 = scmp.ne.s32.totalorder %s116, %s117
      %p126 = scmp.eq.s32.totalorder %s38, 0
      %p127 = por %p125, %p126
      %p128 = scmp.ne.s32.totalorder %s116, %s117
      %p129 = scmp.eq.s32.totalorder %s39, 1
      %p130 = por %p128, %p129
      %p132 = scmp.ne.s32.totalorder %s117, %s131
      %p133 = scmp.eq.s32.totalorder %s39, 0
      %p134 = por %p132, %p133
      %s136 = sadd.s32 %s135, 1
      %p139 = scmp.eq.s32.totalorder %s33, 1
      %p140 = scmp.ne.s32.totalorder %s135, %s137
      %p141 = scmp.eq.s32.totalorder %s33, 0
      %p142 = por %p140, %p141
      %p143 = scmp.ne.s32.totalorder %s135, %s137
      %p144 = scmp.eq.s32.totalorder %s38, 1
      %p145 = por %p143, %p144
      %p146 = scmp.ne.s32.totalorder %s137, %s138
      %p147 = scmp.eq.s32.totalorder %s38, 0
      %p148 = por %p146, %p147
      %p149 = scmp.ne.s32.totalorder %s137, %s138
      %p150 = scmp.eq.s32.totalorder %s39, 1
      %p151 = por %p149, %p150
      %p153 = scmp.ne.s32.totalorder %s138, %s152
      %p154 = scmp.eq.s32.totalorder %s39, 0
      %p155 = por %p153, %p154
      %s157 = sadd.s32 %s156, 1
      %p160 = scmp.eq.s32.totalorder %s33, 1
      %p161 = scmp.ne.s32.totalorder %s156, %s158
      %p162 = scmp.eq.s32.totalorder %s33, 0
      %p163 = por %p161, %p162
      %p164 = scmp.ne.s32.totalorder %s156, %s158
      %p165 = scmp.eq.s32.totalorder %s38, 1
      %p166 = por %p164, %p165
      %p167 = scmp.ne.s32.totalorder %s158, %s159
      %p168 = scmp.eq.s32.totalorder %s38, 0
      %p169 = por %p167, %p168
      %p170 = scmp.ne.s32.totalorder %s158, %s159
      %p171 = scmp.eq.s32.totalorder %s39, 1
      %p172 = por %p170, %p171
      %p174 = scmp.ne.s32.totalorder %s159, %s173
      %p175 = scmp.eq.s32.totalorder %s39, 0
      %p176 = por %p174, %p175
      %s178 = sadd.s32 %s177, 1
      %p181 = scmp.eq.s32.totalorder %s33, 1
      %p182 = scmp.ne.s32.totalorder %s177, %s179
      %p183 = scmp.eq.s32.totalorder %s33, 0
      %p184 = por %p182, %p183
      %p185 = scmp.ne.s32.totalorder %s177, %s179
      %p186 = scmp.eq.s32.totalorder %s38, 1
      %p187 = por %p185, %p186
      %p188 = scmp.ne.s32.totalorder %s179, %s180
      %p189 = scmp.eq.s32.totalorder %s38, 0
      %p190 = por %p188, %p189
      %p191 = scmp.ne.s32.totalorder %s179, %s180
      %p192 = scmp.eq.s32.totalorder %s39, 1
      %p193 = por %p191, %p192
      %p195 = scmp.ne.s32.totalorder %s180, %s194
      %p196 = scmp.eq.s32.totalorder %s39, 0
      %p197 = por %p195, %p196
      %s199 = sadd.s32 %s198, 1
      %p202 = scmp.eq.s32.totalorder %s33, 1
      %p203 = scmp.ne.s32.totalorder %s198, %s200
      %p204 = scmp.eq.s32.totalorder %s33, 0
      %p205 = por %p203, %p204
      %p206 = scmp.ne.s32.totalorder %s198, %s200
      %p207 = scmp.eq.s32.totalorder %s38, 1
      %p208 = por %p206, %p207
      %p209 = scmp.ne.s32.totalorder %s200, %s201
      %p210 = scmp.eq.s32.totalorder %s38, 0
      %p211 = por %p209, %p210
      %p212 = scmp.ne.s32.totalorder %s200, %s201
      %p213 = scmp.eq.s32.totalorder %s39, 1
      %p214 = por %p212, %p213
      %p216 = scmp.ne.s32.totalorder %s201, %s215
      %p217 = scmp.eq.s32.totalorder %s39, 0
      %p218 = por %p216, %p217
      %s220 = sadd.s32 %s219, 1
      %p223 = scmp.eq.s32.totalorder %s33, 1
      %p224 = scmp.ne.s32.totalorder %s219, %s221
      %p225 = scmp.eq.s32.totalorder %s33, 0
      %p226 = por %p224, %p225
      %p227 = scmp.ne.s32.totalorder %s219, %s221
      %p228 = scmp.eq.s32.totalorder %s38, 1
      %p229 = por %p227, %p228
      %p230 = scmp.ne.s32.totalorder %s221, %s222
      %p231 = scmp.eq.s32.totalorder %s38, 0
      %p232 = por %p230, %p231
      %p233 = scmp.ne.s32.totalorder %s221, %s222
      %p234 = scmp.eq.s32.totalorder %s39, 1
      %p235 = por %p233, %p234
      %p237 = scmp.ne.s32.totalorder %s222, %s236
      %p238 = scmp.eq.s32.totalorder %s39, 0
      %p239 = por %p237, %p238
      %s241 = sadd.s32 %s240, 1
      %p244 = scmp.eq.s32.totalorder %s33, 1
      %p245 = scmp.ne.s32.totalorder %s240, %s242
      %p246 = scmp.eq.s32.totalorder %s33, 0
      %p247 = por %p245, %p246
      %p248 = scmp.ne.s32.totalorder %s240, %s242
      %p249 = scmp.eq.s32.totalorder %s38, 1
      %p250 = por %p248, %p249
      %p251 = scmp.ne.s32.totalorder %s242, %s243
      %p252 = scmp.eq.s32.totalorder %s38, 0
      %p253 = por %p251, %p252
      %p254 = scmp.ne.s32.totalorder %s242, %s243
      %p255 = scmp.eq.s32.totalorder %s39, 1
      %p256 = por %p254, %p255
      %p258 = scmp.ne.s32.totalorder %s243, %s257
      %p259 = scmp.eq.s32.totalorder %s39, 0
      %p260 = por %p258, %p259
      %s262 = sadd.s32 %s261, 1
      %p265 = scmp.eq.s32.totalorder %s33, 1
      %p266 = scmp.ne.s32.totalorder %s261, %s263
      %p267 = scmp.eq.s32.totalorder %s33, 0
      %p268 = por %p266, %p267
      %p269 = scmp.ne.s32.totalorder %s261, %s263
      %p270 = scmp.eq.s32.totalorder %s38, 1
      %p271 = por %p269, %p270
      %p272 = scmp.ne.s32.totalorder %s263, %s264
      %p273 = scmp.eq.s32.totalorder %s38, 0
      %p274 = por %p272, %p273
      %p275 = scmp.ne.s32.totalorder %s263, %s264
      %p276 = scmp.eq.s32.totalorder %s39, 1
      %p277 = por %p275, %p276
      %p279 = scmp.ne.s32.totalorder %s264, %s278
      %p280 = scmp.eq.s32.totalorder %s39, 0
      %p281 = por %p279, %p280
      %s283 = sadd.s32 %s282, 1
      %p286 = scmp.eq.s32.totalorder %s33, 1
      %p287 = scmp.ne.s32.totalorder %s282, %s284
      %p288 = scmp.eq.s32.totalorder %s33, 0
      %p289 = por %p287, %p288
      %p290 = scmp.ne.s32.totalorder %s282, %s284
      %p291 = scmp.eq.s32.totalorder %s38, 1
      %p292 = por %p290, %p291
      %p293 = scmp.ne.s32.totalorder %s284, %s285
      %p294 = scmp.eq.s32.totalorder %s38, 0
      %p295 = por %p293, %p294
      %p296 = scmp.ne.s32.totalorder %s284, %s285
      %p297 = scmp.eq.s32.totalorder %s39, 1
      %p298 = por %p296, %p297
      %p300 = scmp.ne.s32.totalorder %s285, %s299
      %p301 = scmp.eq.s32.totalorder %s39, 0
      %p302 = por %p300, %p301
      %s304 = sadd.s32 %s303, 1
      %p307 = scmp.eq.s32.totalorder %s33, 1
      %p308 = scmp.ne.s32.totalorder %s303, %s305
      %p309 = scmp.eq.s32.totalorder %s33, 0
      %p310 = por %p308, %p309
      %p311 = scmp.ne.s32.totalorder %s303, %s305
      %p312 = scmp.eq.s32.totalorder %s38, 1
      %p313 = por %p311, %p312
      %p314 = scmp.ne.s32.totalorder %s305, %s306
      %p315 = scmp.eq.s32.totalorder %s38, 0
      %p316 = por %p314, %p315
      %p317 = scmp.ne.s32.totalorder %s305, %s306
      %p318 = scmp.eq.s32.totalorder %s39, 1
      %p319 = por %p317, %p318
      %p321 = scmp.ne.s32.totalorder %s306, %s320
      %p322 = scmp.eq.s32.totalorder %s39, 0
      %p323 = por %p321, %p322
      %s325 = sadd.s32 %s324, 1
      %p328 = scmp.eq.s32.totalorder %s33, 1
      %p329 = scmp.ne.s32.totalorder %s324, %s326
      %p330 = scmp.eq.s32.totalorder %s33, 0
      %p331 = por %p329, %p330
      %p332 = scmp.ne.s32.totalorder %s324, %s326
      %p333 = scmp.eq.s32.totalorder %s38, 1
      %p334 = por %p332, %p333
      %p335 = scmp.ne.s32.totalorder %s326, %s327
      %p336 = scmp.eq.s32.totalorder %s38, 0
      %p337 = por %p335, %p336
      %p338 = scmp.ne.s32.totalorder %s326, %s327
      %p339 = scmp.eq.s32.totalorder %s39, 1
      %p340 = por %p338, %p339
      %p342 = scmp.ne.s32.totalorder %s327, %s341
      %p343 = scmp.eq.s32.totalorder %s39, 0
      %p344 = por %p342, %p343
      %s346 = sadd.s32 %s345, 1
      %p349 = scmp.eq.s32.totalorder %s33, 1
      %p350 = scmp.ne.s32.totalorder %s345, %s347
      %p351 = scmp.eq.s32.totalorder %s33, 0
      %p352 = por %p350, %p351
      %p353 = scmp.ne.s32.totalorder %s345, %s347
      %p354 = scmp.eq.s32.totalorder %s38, 1
      %p355 = por %p353, %p354
      %p356 = scmp.ne.s32.totalorder %s347, %s348
      %p357 = scmp.eq.s32.totalorder %s38, 0
      %p358 = por %p356, %p357
      %p359 = scmp.ne.s32.totalorder %s347, %s348
      %p360 = scmp.eq.s32.totalorder %s39, 1
      %p361 = por %p359, %p360
      %p363 = scmp.ne.s32.totalorder %s348, %s362
      %p364 = scmp.eq.s32.totalorder %s39, 0
      %p365 = por %p363, %p364
      %s367 = sadd.s32 %s366, 1
      %p370 = scmp.eq.s32.totalorder %s33, 1
      %p371 = scmp.ne.s32.totalorder %s366, %s368
      %p372 = scmp.eq.s32.totalorder %s33, 0
      %p373 = por %p371, %p372
      %p374 = scmp.ne.s32.totalorder %s366, %s368
      %p375 = scmp.eq.s32.totalorder %s38, 1
      %p376 = por %p374, %p375
      %p377 = scmp.ne.s32.totalorder %s368, %s369
      %p378 = scmp.eq.s32.totalorder %s38, 0
      %p379 = por %p377, %p378
      %p380 = scmp.ne.s32.totalorder %s368, %s369
      %p381 = scmp.eq.s32.totalorder %s39, 1
      %p382 = por %p380, %p381
      %p384 = scmp.ne.s32.totalorder %s369, %s383
      %p385 = scmp.eq.s32.totalorder %s39, 0
      %p386 = por %p384, %p385
      %s387 = ssub.s32 %s33, %s40
      %p388 = scmp.eq.s32.totalorder %s387, 0
      %s390 = sadd.s32 %s389, 1
      %s391 = scalar_select %p388, %s389, %s390
      %p394 = pneg %p388
      %p395 = scmp.eq.s32.totalorder %s33, 1
      %p396 = por %p394, %p395
      %p397 = scmp.ne.s32.totalorder %s389, %s392
      %p398 = scmp.eq.s32.totalorder %s33, 0
      %p399 = por %p397, %p398
      %p400 = scmp.ne.s32.totalorder %s389, %s392
      %p401 = scmp.eq.s32.totalorder %s38, 1
      %p402 = por %p400, %p401
      %p403 = scmp.ne.s32.totalorder %s392, %s393
      %p404 = scmp.eq.s32.totalorder %s38, 0
      %p405 = por %p403, %p404
      %p406 = scmp.ne.s32.totalorder %s392, %s393
      %p407 = scmp.eq.s32.totalorder %s39, 1
      %p408 = por %p406, %p407
      %p410 = scmp.ne.s32.totalorder %s393, %s409
      %p411 = scmp.eq.s32.totalorder %s39, 0
      %p412 = por %p410, %p411
      %p413 = scmp.le.s32.totalorder 1, %s33
      %p414 = scmp.lt.s32.totalorder %s33, 3
      %p415 = pnand %p413, %p414
      %p416 = pneg %p415
      // Predicated region
      $region9: #{tpu_custom_call.1} parent=5 // pred_check
        _
      $region10: #{tpu_custom_call.1} parent=5 // pred_check_branch
        %418 = sbr.rel (%p415) target = $region12
      $region11: #{tpu_custom_call.1} parent=5 // pred_region
        %s419 = ssub.s32 %s33, 1
        // Predicated region
        $region13: #{tpu_custom_call.1} parent=11 // pred_check
          %p420 = pneg %p106
        $region14: #{tpu_custom_call.1} parent=11 // pred_check_branch
          %422 = sbr.rel (%p420) target = $region16
        $region15: #{tpu_custom_call.1} parent=11 // pred_region
          %424 = vsyncadd [#allocation6], 0
          %s426 = sshll.u32 %s2, 4
          %s427 = int_to_ptr.hbm [resolvable:$true] %s426
          %s428 = sshll.u32 [#allocation7], 4
          %s429 = int_to_ptr.vmem [resolvable:$true] %s428
          %431 = dma.hbm_to_vmem [thread:$0]  %s427, 16, %s429, [#allocation6]
        $region16: #{tpu_custom_call.1} parent=11 // pred_fallthru
          _
        // Predicated region
        $region17: #{tpu_custom_call.1} parent=11 // pred_check
          %p432 = pneg %p127
        $region18: #{tpu_custom_call.1} parent=11 // pred_check_branch
          %434 = sbr.rel (%p432) target = $region20
        $region19: #{tpu_custom_call.1} parent=11 // pred_region
          %436 = vsyncadd [#allocation9], 0
          %s438 = sshll.u32 %s3, 4
          %s439 = int_to_ptr.hbm [resolvable:$true] %s438
          %s440 = sshll.u32 [#allocation8], 4
          %s441 = int_to_ptr.vmem [resolvable:$true] %s440
          %443 = dma.hbm_to_vmem [thread:$0]  %s439, 16, %s441, [#allocation9]
        $region20: #{tpu_custom_call.1} parent=11 // pred_fallthru
          _
        // Predicated region
        $region21: #{tpu_custom_call.1} parent=11 // pred_check
          %p444 = pneg %p148
        $region22: #{tpu_custom_call.1} parent=11 // pred_check_branch
          %446 = sbr.rel (%p444) target = $region24
        $region23: #{tpu_custom_call.1} parent=11 // pred_region
          _
        $region24: #{tpu_custom_call.1} parent=11 // pred_fallthru
          _
        // Predicated region
        $region25: #{tpu_custom_call.1} parent=11 // pred_check
          %p447 = pneg %p169
        $region26: #{tpu_custom_call.1} parent=11 // pred_check_branch
          %449 = sbr.rel (%p447) target = $region28
        $region27: #{tpu_custom_call.1} parent=11 // pred_region
          _
        $region28: #{tpu_custom_call.1} parent=11 // pred_fallthru
          _
        // Predicated region
        $region29: #{tpu_custom_call.1} parent=11 // pred_check
          %p450 = pneg %p190
        $region30: #{tpu_custom_call.1} parent=11 // pred_check_branch
          %452 = sbr.rel (%p450) target = $region32
        $region31: #{tpu_custom_call.1} parent=11 // pred_region
          _
        $region32: #{tpu_custom_call.1} parent=11 // pred_fallthru
          _
        // Predicated region
        $region33: #{tpu_custom_call.1} parent=11 // pred_check
          %p453 = pneg %p211
        $region34: #{tpu_custom_call.1} parent=11 // pred_check_branch
          %455 = sbr.rel (%p453) target = $region36
        $region35: #{tpu_custom_call.1} parent=11 // pred_region
          _
        $region36: #{tpu_custom_call.1} parent=11 // pred_fallthru
          _
        // Predicated region
        $region37: #{tpu_custom_call.1} parent=11 // pred_check
          %p456 = pneg %p232
        $region38: #{tpu_custom_call.1} parent=11 // pred_check_branch
          %458 = sbr.rel (%p456) target = $region40
        $region39: #{tpu_custom_call.1} parent=11 // pred_region
          %460 = vsyncadd [#allocation9], 0
          %s461 = sshll.u32 %s8, 4
          %s462 = int_to_ptr.hbm [resolvable:$true] %s461
          %s463 = sshll.u32 [#allocation10], 4
          %s464 = int_to_ptr.vmem [resolvable:$true] %s463
          %469 = dma.hbm_to_vmem [thread:$0]  %s462, 32, %s464, [#allocation9], 16, 16, 1
        $region40: #{tpu_custom_call.1} parent=11 // pred_fallthru
          _
        // Predicated region
        $region41: #{tpu_custom_call.1} parent=11 // pred_check
          %p470 = pneg %p253
        $region42: #{tpu_custom_call.1} parent=11 // pred_check_branch
          %472 = sbr.rel (%p470) target = $region44
        $region43: #{tpu_custom_call.1} parent=11 // pred_region
          _
        $region44: #{tpu_custom_call.1} parent=11 // pred_fallthru
          _
        // Predicated region
        $region45: #{tpu_custom_call.1} parent=11 // pred_check
          %p473 = pneg %p274
        $region46: #{tpu_custom_call.1} parent=11 // pred_check_branch
          %475 = sbr.rel (%p473) target = $region48
        $region47: #{tpu_custom_call.1} parent=11 // pred_region
          _
        $region48: #{tpu_custom_call.1} parent=11 // pred_fallthru
          _
        // Predicated region
        $region49: #{tpu_custom_call.1} parent=11 // pred_check
          %p476 = pneg %p295
        $region50: #{tpu_custom_call.1} parent=11 // pred_check_branch
          %478 = sbr.rel (%p476) target = $region52
        $region51: #{tpu_custom_call.1} parent=11 // pred_region
          _
        $region52: #{tpu_custom_call.1} parent=11 // pred_fallthru
          _
        // Predicated region
        $region53: #{tpu_custom_call.1} parent=11 // pred_check
          %p479 = pneg %p316
        $region54: #{tpu_custom_call.1} parent=11 // pred_check_branch
          %481 = sbr.rel (%p479) target = $region56
        $region55: #{tpu_custom_call.1} parent=11 // pred_region
          _
        $region56: #{tpu_custom_call.1} parent=11 // pred_fallthru
          _
        // Predicated region
        $region57: #{tpu_custom_call.1} parent=11 // pred_check
          %p482 = pneg %p337
        $region58: #{tpu_custom_call.1} parent=11 // pred_check_branch
          %484 = sbr.rel (%p482) target = $region60
        $region59: #{tpu_custom_call.1} parent=11 // pred_region
          _
        $region60: #{tpu_custom_call.1} parent=11 // pred_fallthru
          _
        // Predicated region
        $region61: #{tpu_custom_call.1} parent=11 // pred_check
          %p485 = pneg %p358
        $region62: #{tpu_custom_call.1} parent=11 // pred_check_branch
          %487 = sbr.rel (%p485) target = $region64
        $region63: #{tpu_custom_call.1} parent=11 // pred_region
          %489 = vsyncadd [#allocation12], 0
          %s490 = sshll.u32 %s14, 4
          %s491 = int_to_ptr.hbm [resolvable:$true] %s490
          %s492 = sshll.u32 [#allocation11], 4
          %s493 = int_to_ptr.vmem [resolvable:$true] %s492
          %498 = dma.hbm_to_vmem [thread:$0]  %s491, 32, %s493, [#allocation12], 16, 16, 1
        $region64: #{tpu_custom_call.1} parent=11 // pred_fallthru
          _
        // Predicated region
        $region65: #{tpu_custom_call.1} parent=11 // pred_check
          %p499 = pneg %p379
        $region66: #{tpu_custom_call.1} parent=11 // pred_check_branch
          %501 = sbr.rel (%p499) target = $region68
        $region67: #{tpu_custom_call.1} parent=11 // pred_region
          _
        $region68: #{tpu_custom_call.1} parent=11 // pred_fallthru
          _
      $region12: #{tpu_custom_call.1} parent=5 // pred_fallthru
        _
      %p502 = scmp.lt.s32.totalorder %s33, 2
      // Predicated region
      $region69: #{tpu_custom_call.1} parent=5 // pred_check
        %p503 = pneg %p502
      $region70: #{tpu_custom_call.1} parent=5 // pred_check_branch
        %505 = sbr.rel (%p503) target = $region72
      $region71: #{tpu_custom_call.1} parent=5 // pred_region
        // Predicated region
        $region73: #{tpu_custom_call.1} parent=71 // pred_check
          %p506 = pneg %p53
        $region74: #{tpu_custom_call.1} parent=71 // pred_check_branch
          %508 = sbr.rel (%p506) target = $region76
        $region75: #{tpu_custom_call.1} parent=71 // pred_region
          %s509 = sand.u32 %s43, 1
          %s510 = scalar_lea.sflag [#allocation3], %s509
          %s511 = sand.u32 %s43, 1
          %s512 = smul.addr %s511, 8
          %s513 = scalar_lea.vmem [#allocation2], %s512
          %515 = vsyncadd %s510, 0
          %s516 = smul.addr %s33, 8
          %s517 = scalar_lea.hbm %s0, %s516
          %s519 = sshll.u32 %s517, 4
          %s520 = int_to_ptr.hbm [resolvable:$true] %s519
          %s521 = sshll.u32 %s513, 4
          %s522 = int_to_ptr.vmem [resolvable:$true] %s521
          %524 = dma.hbm_to_vmem [thread:$0]  %s520, 128, %s522, %s510
        $region76: #{tpu_custom_call.1} parent=71 // pred_fallthru
          _
        // Predicated region
        $region77: #{tpu_custom_call.1} parent=71 // pred_check
          %p525 = pneg %p79
        $region78: #{tpu_custom_call.1} parent=71 // pred_check_branch
          %527 = sbr.rel (%p525) target = $region80
        $region79: #{tpu_custom_call.1} parent=71 // pred_region
          %s528 = sand.u32 %s33, 1
          %s529 = scalar_lea.sflag [#allocation6], %s528
          %s530 = sand.u32 %s69, 1
          %s531 = scalar_lea.vmem [#allocation5], %s530
          %533 = vsyncadd %s529, 0
          %s534 = scalar_lea.hbm %s1, %s33
          %s536 = sshll.u32 %s534, 4
          %s537 = int_to_ptr.hbm [resolvable:$true] %s536
          %s538 = sshll.u32 %s531, 4
          %s539 = int_to_ptr.vmem [resolvable:$true] %s538
          %541 = dma.hbm_to_vmem [thread:$0]  %s537, 16, %s539, %s529
        $region80: #{tpu_custom_call.1} parent=71 // pred_fallthru
          _
      $region72: #{tpu_custom_call.1} parent=5 // pred_fallthru
        _
      %p542 = scmp.le.s32.totalorder 1, %s33
      %p543 = scmp.lt.s32.totalorder %s33, 3
      %p544 = pnand %p542, %p543
      %p545 = pneg %p544
      // Predicated region
      $region81: #{tpu_custom_call.1} parent=5 // pred_check
        _
      $region82: #{tpu_custom_call.1} parent=5 // pred_check_branch
        %547 = sbr.rel (%p544) target = $region84
      $region83: #{tpu_custom_call.1} parent=5 // pred_region
        %s548 = ssub.s32 %s33, 1
        %s549 = sand.u32 %s46, 1
        %s550 = scalar_lea.sflag [#allocation3], %s549
        %s551 = sand.u32 %s46, 1
        %s552 = smul.addr %s551, 8
        %s553 = scalar_lea.vmem [#allocation2], %s552
        // Predicated region
        $region85: #{tpu_custom_call.1} parent=83 // pred_check
          %p554 = pneg %p59
        $region86: #{tpu_custom_call.1} parent=83 // pred_check_branch
          %556 = sbr.rel (%p554) target = $region88
        $region87: #{tpu_custom_call.1} parent=83 // pred_region
          %558 = dma.done %s550, 128
        $region88: #{tpu_custom_call.1} parent=83 // pred_fallthru
          _
        %s559 = sand.u32 %s38, 1
        %s560 = scalar_lea.sflag [#allocation6], %s559
        %s561 = sand.u32 %s72, 1
        %s562 = scalar_lea.vmem [#allocation5], %s561
        // Predicated region
        $region89: #{tpu_custom_call.1} parent=83 // pred_check
          %p563 = pneg %p85
        $region90: #{tpu_custom_call.1} parent=83 // pred_check_branch
          %565 = sbr.rel (%p563) target = $region92
        $region91: #{tpu_custom_call.1} parent=83 // pred_region
          %567 = dma.done %s560, 16
        $region92: #{tpu_custom_call.1} parent=83 // pred_fallthru
          _
        // Predicated region
        $region93: #{tpu_custom_call.1} parent=83 // pred_check
          %p568 = pneg %p106
        $region94: #{tpu_custom_call.1} parent=83 // pred_check_branch
          %570 = sbr.rel (%p568) target = $region96
        $region95: #{tpu_custom_call.1} parent=83 // pred_region
          %572 = dma.done [#allocation6], 16
        $region96: #{tpu_custom_call.1} parent=83 // pred_fallthru
          _
        // Predicated region
        $region97: #{tpu_custom_call.1} parent=83 // pred_check
          %p573 = pneg %p127
        $region98: #{tpu_custom_call.1} parent=83 // pred_check_branch
          %575 = sbr.rel (%p573) target = $region100
        $region99: #{tpu_custom_call.1} parent=83 // pred_region
          %577 = dma.done [#allocation9], 16
        $region100: #{tpu_custom_call.1} parent=83 // pred_fallthru
          _
        // Predicated region
        $region101: #{tpu_custom_call.1} parent=83 // pred_check
          %p578 = pneg %p232
        $region102: #{tpu_custom_call.1} parent=83 // pred_check_branch
          %580 = sbr.rel (%p578) target = $region104
        $region103: #{tpu_custom_call.1} parent=83 // pred_region
          %582 = dma.done [#allocation9], 32
        $region104: #{tpu_custom_call.1} parent=83 // pred_fallthru
          _
        // Predicated region
        $region105: #{tpu_custom_call.1} parent=83 // pred_check
          %p583 = pneg %p358
        $region106: #{tpu_custom_call.1} parent=83 // pred_check_branch
          %585 = sbr.rel (%p583) target = $region108
        $region107: #{tpu_custom_call.1} parent=83 // pred_region
          %587 = dma.done [#allocation12], 32
        $region108: #{tpu_custom_call.1} parent=83 // pred_fallthru
          _
        %s588 = sand.u32 %s46, 1
        %s589 = scalar_lea.sflag [#allocation3], %s588
        %s590 = sand.u32 %s46, 1
        %s591 = smul.addr %s590, 8
        %s592 = scalar_lea.vmem [#allocation2], %s591
        %p593 = pneg %p59
        %p594 = pneg %p56
        %s595 = sand.u32 %s38, 1
        %s596 = scalar_lea.sflag [#allocation6], %s595
        %s597 = sand.u32 %s72, 1
        %s598 = scalar_lea.vmem [#allocation5], %s597
        %p599 = pneg %p85
        %p600 = pneg %p82
        %p601 = pneg %p106
        %p602 = pneg %p103
        %p603 = pneg %p127
        %p604 = pneg %p124
        %p605 = pneg %p148
        %p606 = pneg %p145
        %p607 = pneg %p169
        %p608 = pneg %p166
        %p609 = pneg %p190
        %p610 = pneg %p187
        %p611 = pneg %p211
        %p612 = pneg %p208
        %p613 = pneg %p232
        %p614 = pneg %p229
        %p615 = pneg %p253
        %p616 = pneg %p250
        %p617 = pneg %p274
        %p618 = pneg %p271
        %p619 = pneg %p295
        %p620 = pneg %p292
        %p621 = pneg %p316
        %p622 = pneg %p313
        %p623 = pneg %p337
        %p624 = pneg %p334
        %p625 = pneg %p358
        %p626 = pneg %p355
        %p627 = pneg %p379
        %p628 = pneg %p376
        %p629 = pneg %p405
        %p630 = pneg %p402
        %s631 = sand.u32 %s392, 1
        %s632 = scalar_lea.sflag [#allocation4], %s631
        %s633 = sand.u32 %s392, 1
        %s634 = smul.addr %s633, 8
        %s635 = scalar_lea.vmem [#allocation13], %s634
        %v636 = vld [vmem:[%s562] sm:$0x1]
        %v637 = vld [vmem:[%s553] sm:$0xff]
        %v638 = vld [vmem:[#allocation7] sm:$0x1]
        %v639 = vld [vmem:[#allocation8] sm:$0x1]
        %vm640 = vcmask 261120
        %v641 = vsel %vm640, %v637, 0.0
        %642 = vadd.xlane.f32.xlu0 %v641
        %v643 = vpop.xlane.xlu0 %642
        %v644 = vrcp.pop 32.0
        %v645 = vmul.f32 32.0, %v644
        %v646 = vsub.f32 1.0, %v645
        %v647 = vmul.f32 %v644, %v646
        %v648 = vadd.f32 %v644, %v647
        %vm649 = vweird.f32 %v644
        %v650 = vsel %vm649, %v644, %v648
        %v651 = vmul.f32 %v643, %v650
        %v652 = vsub.f32 %v637, %v651
        %v653 = vmul.f32 %v652, %v652
        %v654 = vsel %vm640, %v653, 0.0
        %655 = vadd.xlane.f32.xlu0 %v654
        %v656 = vpop.xlane.xlu0 %655
        %v657 = vmul.f32 %v656, %v650
        %v658 = vadd.f32 %v657, 1e-12
        %v659 = vrsqrt.pop %v658
        %v660 = vmul.f32 %v659, %v658
        %v661 = vmul.f32 %v660, %v659
        %v662 = vmul.f32 0.5, %v661
        %v663 = vsub.f32 1.5, %v662
        %v664 = vmul.f32 %v659, %v663
        %vm665 = vweird.f32 %v658
        %vm666 = vweird.f32 %v659
        %vm667 = vmor %vm665, %vm666
        %v668 = vsel %vm667, %v659, %v664
        %v669 = vmul.f32 %v652, %v668
        %v671 = vperm.slane %v638, 0
        %v673 = vmul.f32 %v669, %v671
        %v675 = vperm.slane %v639, 0
        %v677 = vadd.f32 %v673, %v675
        %v678 = vld [vmem:[%s4] sm:$0xff]
        %v679 = vld [vmem:[%s4 + $0x8] sm:$0xff]
        %v680 = vld [vmem:[%s4 + $0x10] sm:$0xff]
        %v681 = vld [vmem:[%s4 + $0x18] sm:$0xff]
        %v682 = vld [vmem:[%s5] sm:$0x1]
        %v684 = vperm.slane %v682, 0
        %v687 = vsel %vm640, %v677, 0
        %689 = vmatpush.msra.mxu0 0.0
        %690 = vmatpush.msra.mxu0 0.0
        %691 = vmatpush.msra.mxu0 0.0
        %692 = vmatpush.msra.mxu0 0.0
        %693 = vmatpush.msra.mxu0 0.0
        %694 = vmatpush.msra.mxu0 0.0
        %695 = vmatpush.msra.mxu0 0.0
        %696 = vmatpush.msra.mxu0 0.0
        %697 = vmatpush.msra.mxu0 0.0
        %698 = vmatpush.msra.mxu0 0.0
        %699 = vmatpush.msra.mxu0 0.0
        %700 = vmatpush.msra.mxu0 0.0
        %701 = vmatpush.msra.mxu0 %v681
        %702 = vmatpush.msra.mxu0 %v680
        %703 = vmatpush.msra.mxu0 %v679
        %704 = vmatpush.msra.mxu0 %v678
        %705 = vmatmul.f32.gmra.mxu0 %v687
        %v706 = vpop.f32.mrf.mxu0
        %v707 = vadd.f32 %v684, %v706
        %708 = vdwg.mxu0
        %v709 = vld [vmem:[%s6] sm:$0xff]
        %v710 = vld [vmem:[%s6 + $0x8] sm:$0xff]
        %v711 = vld [vmem:[%s6 + $0x10] sm:$0xff]
        %v712 = vld [vmem:[%s6 + $0x18] sm:$0xff]
        %v713 = vld [vmem:[%s7] sm:$0x1]
        %715 = vrot.lane.b32.xlu0 %v707, 96
        %v716 = vpop.permute.xlu0 %715
        %vm717 = vcmask 130048
        %v718 = vsel %vm717, %v707, 0
        %v720 = vsel %vm717, %v716, 0
        %722 = vmatpush.xpose.msra.mxu0 0.0
        %723 = vmatpush.xpose.msra.mxu0 0.0
        %724 = vmatpush.xpose.msra.mxu0 0.0
        %725 = vmatpush.xpose.msra.mxu0 0.0
        %726 = vmatpush.xpose.msra.mxu0 0.0
        %727 = vmatpush.xpose.msra.mxu0 0.0
        %728 = vmatpush.xpose.msra.mxu0 0.0
        %729 = vmatpush.xpose.msra.mxu0 0.0
        %730 = vmatpush.xpose.msra.mxu0 0.0
        %731 = vmatpush.xpose.msra.mxu0 0.0
        %732 = vmatpush.xpose.msra.mxu0 0.0
        %733 = vmatpush.xpose.msra.mxu0 0.0
        %734 = vmatpush.xpose.msra.mxu0 0.0
        %735 = vmatpush.xpose.msra.mxu0 0.0
        %736 = vmatpush.xpose.msra.mxu0 0.0
        %737 = vmatpush.xpose.msra.mxu0 %v720
        %738 = vmatmul.f32.gmra.mxu0 %v718
        %v739 = vpop.f32.mrf.mxu0
        %v740 = vadd.f32 0.0, %v739
        %741 = vdwg.mxu0
        %v742 = vmul.f32 %v740, 0.25
        %v744 = vperm.slane %v636, 0
        %v746 = vadd.f32 %v742, %v744
        %vm747 = vcmask 64512
        %v748 = vsel %vm747, %v746, -inf
        %749 = vmax.xlane.f32.xlu0 %v748
        %v750 = vpop.xlane.xlu0 %749
        %v751 = vsub.f32 %v746, %v750
        %v752 = vmul.f32 %v751, 1.442695
        %v753 = vpow.pop %v752
        %v754 = vsel %vm747, %v753, 0.0
        %755 = vadd.xlane.f32.xlu0 %v754
        %v756 = vpop.xlane.xlu0 %755
        %v757 = vrcp.pop %v756
        %v758 = vmul.f32 %v753, %v757
        %759 = vrot.lane.b32.xlu0 %v707, 64
        %v760 = vpop.permute.xlu0 %759
        %v763 = vsel %vm747, %v758, 0
        %765 = vmatpush.msra.mxu0 0.0
        %766 = vmatpush.msra.mxu0 0.0
        %767 = vmatpush.msra.mxu0 0.0
        %768 = vmatpush.msra.mxu0 0.0
        %769 = vmatpush.msra.mxu0 0.0
        %770 = vmatpush.msra.mxu0 0.0
        %771 = vmatpush.msra.mxu0 0.0
        %772 = vmatpush.msra.mxu0 0.0
        %773 = vmatpush.msra.mxu0 0.0
        %774 = vmatpush.msra.mxu0 0.0
        %775 = vmatpush.msra.mxu0 0.0
        %776 = vmatpush.msra.mxu0 0.0
        %777 = vmatpush.msra.mxu0 0.0
        %778 = vmatpush.msra.mxu0 0.0
        %779 = vmatpush.msra.mxu0 0.0
        %780 = vmatpush.msra.mxu0 %v760
        %781 = vmatmul.f32.gmra.mxu0 %v763
        %v782 = vpop.f32.mrf.mxu0
        %v783 = vadd.f32 0.0, %v782
        %784 = vdwg.mxu0
        %v786 = vsel %vm717, %v783, 0
        %788 = vmatpush.msra.mxu0 0.0
        %789 = vmatpush.msra.mxu0 0.0
        %790 = vmatpush.msra.mxu0 0.0
        %791 = vmatpush.msra.mxu0 0.0
        %792 = vmatpush.msra.mxu0 0.0
        %793 = vmatpush.msra.mxu0 0.0
        %794 = vmatpush.msra.mxu0 0.0
        %795 = vmatpush.msra.mxu0 0.0
        %796 = vmatpush.msra.mxu0 0.0
        %797 = vmatpush.msra.mxu0 0.0
        %798 = vmatpush.msra.mxu0 0.0
        %799 = vmatpush.msra.mxu0 0.0
        %800 = vmatpush.msra.mxu0 0.0
        %801 = vmatpush.msra.mxu0 0.0
        %802 = vmatpush.msra.mxu0 %v710
        %803 = vmatpush.msra.mxu0 %v709
        %804 = vmatmul.f32.gmra.mxu0 %v786
        %v805 = vpop.f32.mrf.mxu0
        %v806 = vadd.f32 0.0, %v805
        %807 = vdwg.mxu0
        %v809 = vperm.slane %v713, 0
        %v811 = vadd.f32 %v809, %v806
        %812 = vrot.lane.b32.xlu0 %v707, 112
        %v813 = vpop.permute.xlu0 %812
        %814 = vrot.lane.b32.xlu0 %v707, 80
        %v815 = vpop.permute.xlu0 %814
        %v816 = vsel %vm717, %v813, 0
        %v818 = vsel %vm717, %v815, 0
        %820 = vmatpush.xpose.msra.mxu0 0.0
        %821 = vmatpush.xpose.msra.mxu0 0.0
        %822 = vmatpush.xpose.msra.mxu0 0.0
        %823 = vmatpush.xpose.msra.mxu0 0.0
        %824 = vmatpush.xpose.msra.mxu0 0.0
        %825 = vmatpush.xpose.msra.mxu0 0.0
        %826 = vmatpush.xpose.msra.mxu0 0.0
        %827 = vmatpush.xpose.msra.mxu0 0.0
        %828 = vmatpush.xpose.msra.mxu0 0.0
        %829 = vmatpush.xpose.msra.mxu0 0.0
        %830 = vmatpush.xpose.msra.mxu0 0.0
        %831 = vmatpush.xpose.msra.mxu0 0.0
        %832 = vmatpush.xpose.msra.mxu0 0.0
        %833 = vmatpush.xpose.msra.mxu0 0.0
        %834 = vmatpush.xpose.msra.mxu0 0.0
        %835 = vmatpush.xpose.msra.mxu0 %v818
        %836 = vmatmul.f32.gmra.mxu0 %v816
        %v837 = vpop.f32.mrf.mxu0
        %v838 = vadd.f32 0.0, %v837
        %839 = vdwg.mxu0
        %v840 = vmul.f32 %v838, 0.25
        %v841 = vadd.f32 %v840, %v744
        %v842 = vsel %vm747, %v841, -inf
        %843 = vmax.xlane.f32.xlu0 %v842
        %v844 = vpop.xlane.xlu0 %843
        %v845 = vsub.f32 %v841, %v844
        %v846 = vmul.f32 %v845, 1.442695
        %v847 = vpow.pop %v846
        %v848 = vsel %vm747, %v847, 0.0
        %849 = vadd.xlane.f32.xlu0 %v848
        %v850 = vpop.xlane.xlu0 %849
        %v851 = vrcp.pop %v850
        %v852 = vmul.f32 %v847, %v851
        %853 = vrot.lane.b32.xlu0 %v707, 48
        %v854 = vpop.permute.xlu0 %853
        %v857 = vsel %vm747, %v852, 0
        %859 = vmatpush.msra.mxu0 0.0
        %860 = vmatpush.msra.mxu0 0.0
        %861 = vmatpush.msra.mxu0 0.0
        %862 = vmatpush.msra.mxu0 0.0
        %863 = vmatpush.msra.mxu0 0.0
        %864 = vmatpush.msra.mxu0 0.0
        %865 = vmatpush.msra.mxu0 0.0
        %866 = vmatpush.msra.mxu0 0.0
        %867 = vmatpush.msra.mxu0 0.0
        %868 = vmatpush.msra.mxu0 0.0
        %869 = vmatpush.msra.mxu0 0.0
        %870 = vmatpush.msra.mxu0 0.0
        %871 = vmatpush.msra.mxu0 0.0
        %872 = vmatpush.msra.mxu0 0.0
        %873 = vmatpush.msra.mxu0 0.0
        %874 = vmatpush.msra.mxu0 %v854
        %875 = vmatmul.f32.gmra.mxu0 %v857
        %v876 = vpop.f32.mrf.mxu0
        %v877 = vadd.f32 0.0, %v876
        %878 = vdwg.mxu0
        %v880 = vsel %vm717, %v877, 0
        %882 = vmatpush.msra.mxu0 0.0
        %883 = vmatpush.msra.mxu0 0.0
        %884 = vmatpush.msra.mxu0 0.0
        %885 = vmatpush.msra.mxu0 0.0
        %886 = vmatpush.msra.mxu0 0.0
        %887 = vmatpush.msra.mxu0 0.0
        %888 = vmatpush.msra.mxu0 0.0
        %889 = vmatpush.msra.mxu0 0.0
        %890 = vmatpush.msra.mxu0 0.0
        %891 = vmatpush.msra.mxu0 0.0
        %892 = vmatpush.msra.mxu0 0.0
        %893 = vmatpush.msra.mxu0 0.0
        %894 = vmatpush.msra.mxu0 0.0
        %895 = vmatpush.msra.mxu0 0.0
        %896 = vmatpush.msra.mxu0 %v712
        %897 = vmatpush.msra.mxu0 %v711
        %898 = vmatmul.f32.gmra.mxu0 %v880
        %v899 = vpop.f32.mrf.mxu0
        %v900 = vadd.f32 0.0, %v899
        %901 = vdwg.mxu0
        %v902 = vadd.f32 %v811, %v900
        %v903 = vadd.f32 %v677, %v902
        %v904 = vld [vmem:[#allocation10] sm:$0x1]
        %v905 = vld [vmem:[%s9] sm:$0x1]
        %v906 = vsel %vm640, %v903, 0.0
        %907 = vadd.xlane.f32.xlu0 %v906
        %v908 = vpop.xlane.xlu0 %907
        %v909 = vmul.f32 %v908, %v650
        %v910 = vsub.f32 %v903, %v909
        %v911 = vmul.f32 %v910, %v910
        %v912 = vsel %vm640, %v911, 0.0
        %913 = vadd.xlane.f32.xlu0 %v912
        %v914 = vpop.xlane.xlu0 %913
        %v915 = vmul.f32 %v914, %v650
        %v916 = vadd.f32 %v915, 1e-12
        %v917 = vrsqrt.pop %v916
        %v918 = vmul.f32 %v917, %v916
        %v919 = vmul.f32 %v918, %v917
        %v920 = vmul.f32 0.5, %v919
        %v921 = vsub.f32 1.5, %v920
        %v922 = vmul.f32 %v917, %v921
        %vm923 = vweird.f32 %v916
        %vm924 = vweird.f32 %v917
        %vm925 = vmor %vm923, %vm924
        %v926 = vsel %vm925, %v917, %v922
        %v927 = vmul.f32 %v910, %v926
        %v929 = vperm.slane %v904, 0
        %v931 = vmul.f32 %v927, %v929
        %v933 = vperm.slane %v905, 0
        %v935 = vadd.f32 %v931, %v933
        %v936 = vld [vmem:[%s10] sm:$0xff]
        %v937 = vld [vmem:[%s10 + $0x8] sm:$0xff]
        %v938 = vld [vmem:[%s10 + $0x10] sm:$0xff]
        %v939 = vld [vmem:[%s10 + $0x18] sm:$0xff]
        %v940 = vld [vmem:[%s11] sm:$0x1]
        %v942 = vperm.slane %v940, 0
        %v945 = vsel %vm640, %v935, 0
        %947 = vmatpush.msra.mxu0 0.0
        %948 = vmatpush.msra.mxu0 0.0
        %949 = vmatpush.msra.mxu0 0.0
        %950 = vmatpush.msra.mxu0 0.0
        %951 = vmatpush.msra.mxu0 0.0
        %952 = vmatpush.msra.mxu0 0.0
        %953 = vmatpush.msra.mxu0 0.0
        %954 = vmatpush.msra.mxu0 0.0
        %955 = vmatpush.msra.mxu0 0.0
        %956 = vmatpush.msra.mxu0 0.0
        %957 = vmatpush.msra.mxu0 0.0
        %958 = vmatpush.msra.mxu0 0.0
        %959 = vmatpush.msra.mxu0 %v939
        %960 = vmatpush.msra.mxu0 %v938
        %961 = vmatpush.msra.mxu0 %v937
        %962 = vmatpush.msra.mxu0 %v936
        %963 = vmatmul.f32.gmra.mxu0 %v945
        %v964 = vpop.f32.mrf.mxu0
        %v965 = vadd.f32 %v942, %v964
        %966 = vdwg.mxu0
        %v967 = vmul.f32 %v965, 0.5
        %v968 = vmul.f32 %v965, 0.044715
        %v969 = vmul.f32 %v968, %v965
        %v970 = vmul.f32 %v969, %v965
        %v971 = vadd.f32 %v965, %v970
        %v972 = vmul.f32 %v971, 0.7978846
        %v973 = vtanh.pop %v972
        %v974 = vadd.f32 %v973, 1.0
        %v975 = vmul.f32 %v967, %v974
        %v976 = vld [vmem:[%s12] sm:$0xff]
        %v977 = vld [vmem:[%s12 + $0x8] sm:$0xff]
        %v978 = vld [vmem:[%s12 + $0x10] sm:$0xff]
        %v979 = vld [vmem:[%s12 + $0x18] sm:$0xff]
        %v980 = vld [vmem:[%s12 + $0x20] sm:$0xff]
        %v981 = vld [vmem:[%s12 + $0x28] sm:$0xff]
        %v982 = vld [vmem:[%s12 + $0x30] sm:$0xff]
        %v983 = vld [vmem:[%s12 + $0x38] sm:$0xff]
        %v984 = vld [vmem:[%s13] sm:$0x1]
        %v986 = vperm.slane %v984, 0
        %vm988 = vcmask 523264
        %v990 = vsel %vm988, %v975, 0
        %992 = vmatpush.msra.mxu0 0.0
        %993 = vmatpush.msra.mxu0 0.0
        %994 = vmatpush.msra.mxu0 0.0
        %995 = vmatpush.msra.mxu0 0.0
        %996 = vmatpush.msra.mxu0 0.0
        %997 = vmatpush.msra.mxu0 0.0
        %998 = vmatpush.msra.mxu0 0.0
        %999 = vmatpush.msra.mxu0 0.0
        %1000 = vmatpush.msra.mxu0 %v983
        %1001 = vmatpush.msra.mxu0 %v982
        %1002 = vmatpush.msra.mxu0 %v981
        %1003 = vmatpush.msra.mxu0 %v980
        %1004 = vmatpush.msra.mxu0 %v979
        %1005 = vmatpush.msra.mxu0 %v978
        %1006 = vmatpush.msra.mxu0 %v977
        %1007 = vmatpush.msra.mxu0 %v976
        %1008 = vmatmul.f32.gmra.mxu0 %v990
        %v1009 = vpop.f32.mrf.mxu0
        %v1010 = vadd.f32 %v986, %v1009
        %1011 = vdwg.mxu0
        %v1012 = vadd.f32 %v935, %v1010
        %v1013 = vld [vmem:[#allocation11] sm:$0x1]
        %v1014 = vld [vmem:[%s15] sm:$0x1]
        %v1015 = vsel %vm640, %v1012, 0.0
        %1016 = vadd.xlane.f32.xlu0 %v1015
        %v1017 = vpop.xlane.xlu0 %1016
        %v1018 = vmul.f32 %v1017, %v650
        %v1019 = vsub.f32 %v1012, %v1018
        %v1020 = vmul.f32 %v1019, %v1019
        %v1021 = vsel %vm640, %v1020, 0.0
        %1022 = vadd.xlane.f32.xlu0 %v1021
        %v1023 = vpop.xlane.xlu0 %1022
        %v1024 = vmul.f32 %v1023, %v650
        %v1025 = vadd.f32 %v1024, 1e-12
        %v1026 = vrsqrt.pop %v1025
        %v1027 = vmul.f32 %v1026, %v1025
        %v1028 = vmul.f32 %v1027, %v1026
        %v1029 = vmul.f32 0.5, %v1028
        %v1030 = vsub.f32 1.5, %v1029
        %v1031 = vmul.f32 %v1026, %v1030
        %vm1032 = vweird.f32 %v1025
        %vm1033 = vweird.f32 %v1026
        %vm1034 = vmor %vm1032, %vm1033
        %v1035 = vsel %vm1034, %v1026, %v1031
        %v1036 = vmul.f32 %v1019, %v1035
        %v1038 = vperm.slane %v1013, 0
        %v1040 = vmul.f32 %v1036, %v1038
        %v1042 = vperm.slane %v1014, 0
        %v1044 = vadd.f32 %v1040, %v1042
        %s1045 = scalar_lea.vmem %s4, 32
        %v1046 = vld [vmem:[%s1045] sm:$0xff]
        %v1047 = vld [vmem:[%s1045 + $0x8] sm:$0xff]
        %v1048 = vld [vmem:[%s1045 + $0x10] sm:$0xff]
        %v1049 = vld [vmem:[%s1045 + $0x18] sm:$0xff]
        %s1050 = scalar_lea.vmem %s5, 1
        %v1051 = vld [vmem:[%s1050] sm:$0x1]
        %v1053 = vperm.slane %v1051, 0
        %v1056 = vsel %vm640, %v1044, 0
        %1058 = vmatpush.msra.mxu0 0.0
        %1059 = vmatpush.msra.mxu0 0.0
        %1060 = vmatpush.msra.mxu0 0.0
        %1061 = vmatpush.msra.mxu0 0.0
        %1062 = vmatpush.msra.mxu0 0.0
        %1063 = vmatpush.msra.mxu0 0.0
        %1064 = vmatpush.msra.mxu0 0.0
        %1065 = vmatpush.msra.mxu0 0.0
        %1066 = vmatpush.msra.mxu0 0.0
        %1067 = vmatpush.msra.mxu0 0.0
        %1068 = vmatpush.msra.mxu0 0.0
        %1069 = vmatpush.msra.mxu0 0.0
        %1070 = vmatpush.msra.mxu0 %v1049
        %1071 = vmatpush.msra.mxu0 %v1048
        %1072 = vmatpush.msra.mxu0 %v1047
        %1073 = vmatpush.msra.mxu0 %v1046
        %1074 = vmatmul.f32.gmra.mxu0 %v1056
        %v1075 = vpop.f32.mrf.mxu0
        %v1076 = vadd.f32 %v1053, %v1075
        %1077 = vdwg.mxu0
        %s1078 = scalar_lea.vmem %s6, 32
        %v1079 = vld [vmem:[%s1078] sm:$0xff]
        %v1080 = vld [vmem:[%s1078 + $0x8] sm:$0xff]
        %v1081 = vld [vmem:[%s1078 + $0x10] sm:$0xff]
        %v1082 = vld [vmem:[%s1078 + $0x18] sm:$0xff]
        %s1083 = scalar_lea.vmem %s7, 1
        %v1084 = vld [vmem:[%s1083] sm:$0x1]
        %1086 = vrot.lane.b32.xlu0 %v1076, 96
        %v1087 = vpop.permute.xlu0 %1086
        %v1088 = vsel %vm717, %v1076, 0
        %v1090 = vsel %vm717, %v1087, 0
        %1092 = vmatpush.xpose.msra.mxu0 0.0
        %1093 = vmatpush.xpose.msra.mxu0 0.0
        %1094 = vmatpush.xpose.msra.mxu0 0.0
        %1095 = vmatpush.xpose.msra.mxu0 0.0
        %1096 = vmatpush.xpose.msra.mxu0 0.0
        %1097 = vmatpush.xpose.msra.mxu0 0.0
        %1098 = vmatpush.xpose.msra.mxu0 0.0
        %1099 = vmatpush.xpose.msra.mxu0 0.0
        %1100 = vmatpush.xpose.msra.mxu0 0.0
        %1101 = vmatpush.xpose.msra.mxu0 0.0
        %1102 = vmatpush.xpose.msra.mxu0 0.0
        %1103 = vmatpush.xpose.msra.mxu0 0.0
        %1104 = vmatpush.xpose.msra.mxu0 0.0
        %1105 = vmatpush.xpose.msra.mxu0 0.0
        %1106 = vmatpush.xpose.msra.mxu0 0.0
        %1107 = vmatpush.xpose.msra.mxu0 %v1090
        %1108 = vmatmul.f32.gmra.mxu0 %v1088
        %v1109 = vpop.f32.mrf.mxu0
        %v1110 = vadd.f32 0.0, %v1109
        %1111 = vdwg.mxu0
        %v1112 = vmul.f32 %v1110, 0.25
        %v1113 = vadd.f32 %v1112, %v744
        %v1114 = vsel %vm747, %v1113, -inf
        %1115 = vmax.xlane.f32.xlu0 %v1114
        %v1116 = vpop.xlane.xlu0 %1115
        %v1117 = vsub.f32 %v1113, %v1116
        %v1118 = vmul.f32 %v1117, 1.442695
        %v1119 = vpow.pop %v1118
        %v1120 = vsel %vm747, %v1119, 0.0
        %1121 = vadd.xlane.f32.xlu0 %v1120
        %v1122 = vpop.xlane.xlu0 %1121
        %v1123 = vrcp.pop %v1122
        %v1124 = vmul.f32 %v1119, %v1123
        %1125 = vrot.lane.b32.xlu0 %v1076, 64
        %v1126 = vpop.permute.xlu0 %1125
        %v1129 = vsel %vm747, %v1124, 0
        %1131 = vmatpush.msra.mxu0 0.0
        %1132 = vmatpush.msra.mxu0 0.0
        %1133 = vmatpush.msra.mxu0 0.0
        %1134 = vmatpush.msra.mxu0 0.0
        %1135 = vmatpush.msra.mxu0 0.0
        %1136 = vmatpush.msra.mxu0 0.0
        %1137 = vmatpush.msra.mxu0 0.0
        %1138 = vmatpush.msra.mxu0 0.0
        %1139 = vmatpush.msra.mxu0 0.0
        %1140 = vmatpush.msra.mxu0 0.0
        %1141 = vmatpush.msra.mxu0 0.0
        %1142 = vmatpush.msra.mxu0 0.0
        %1143 = vmatpush.msra.mxu0 0.0
        %1144 = vmatpush.msra.mxu0 0.0
        %1145 = vmatpush.msra.mxu0 0.0
        %1146 = vmatpush.msra.mxu0 %v1126
        %1147 = vmatmul.f32.gmra.mxu0 %v1129
        %v1148 = vpop.f32.mrf.mxu0
        %v1149 = vadd.f32 0.0, %v1148
        %1150 = vdwg.mxu0
        %v1152 = vsel %vm717, %v1149, 0
        %1154 = vmatpush.msra.mxu0 0.0
        %1155 = vmatpush.msra.mxu0 0.0
        %1156 = vmatpush.msra.mxu0 0.0
        %1157 = vmatpush.msra.mxu0 0.0
        %1158 = vmatpush.msra.mxu0 0.0
        %1159 = vmatpush.msra.mxu0 0.0
        %1160 = vmatpush.msra.mxu0 0.0
        %1161 = vmatpush.msra.mxu0 0.0
        %1162 = vmatpush.msra.mxu0 0.0
        %1163 = vmatpush.msra.mxu0 0.0
        %1164 = vmatpush.msra.mxu0 0.0
        %1165 = vmatpush.msra.mxu0 0.0
        %1166 = vmatpush.msra.mxu0 0.0
        %1167 = vmatpush.msra.mxu0 0.0
        %1168 = vmatpush.msra.mxu0 %v1080
        %1169 = vmatpush.msra.mxu0 %v1079
        %1170 = vmatmul.f32.gmra.mxu0 %v1152
        %v1171 = vpop.f32.mrf.mxu0
        %v1172 = vadd.f32 0.0, %v1171
        %1173 = vdwg.mxu0
        %v1175 = vperm.slane %v1084, 0
        %v1177 = vadd.f32 %v1175, %v1172
        %1178 = vrot.lane.b32.xlu0 %v1076, 112
        %v1179 = vpop.permute.xlu0 %1178
        %1180 = vrot.lane.b32.xlu0 %v1076, 80
        %v1181 = vpop.permute.xlu0 %1180
        %v1182 = vsel %vm717, %v1179, 0
        %v1184 = vsel %vm717, %v1181, 0
        %1186 = vmatpush.xpose.msra.mxu0 0.0
        %1187 = vmatpush.xpose.msra.mxu0 0.0
        %1188 = vmatpush.xpose.msra.mxu0 0.0
        %1189 = vmatpush.xpose.msra.mxu0 0.0
        %1190 = vmatpush.xpose.msra.mxu0 0.0
        %1191 = vmatpush.xpose.msra.mxu0 0.0
        %1192 = vmatpush.xpose.msra.mxu0 0.0
        %1193 = vmatpush.xpose.msra.mxu0 0.0
        %1194 = vmatpush.xpose.msra.mxu0 0.0
        %1195 = vmatpush.xpose.msra.mxu0 0.0
        %1196 = vmatpush.xpose.msra.mxu0 0.0
        %1197 = vmatpush.xpose.msra.mxu0 0.0
        %1198 = vmatpush.xpose.msra.mxu0 0.0
        %1199 = vmatpush.xpose.msra.mxu0 0.0
        %1200 = vmatpush.xpose.msra.mxu0 0.0
        %1201 = vmatpush.xpose.msra.mxu0 %v1184
        %1202 = vmatmul.f32.gmra.mxu0 %v1182
        %v1203 = vpop.f32.mrf.mxu0
        %v1204 = vadd.f32 0.0, %v1203
        %1205 = vdwg.mxu0
        %v1206 = vmul.f32 %v1204, 0.25
        %v1207 = vadd.f32 %v1206, %v744
        %v1208 = vsel %vm747, %v1207, -inf
        %1209 = vmax.xlane.f32.xlu0 %v1208
        %v1210 = vpop.xlane.xlu0 %1209
        %v1211 = vsub.f32 %v1207, %v1210
        %v1212 = vmul.f32 %v1211, 1.442695
        %v1213 = vpow.pop %v1212
        %v1214 = vsel %vm747, %v1213, 0.0
        %1215 = vadd.xlane.f32.xlu0 %v1214
        %v1216 = vpop.xlane.xlu0 %1215
        %v1217 = vrcp.pop %v1216
        %v1218 = vmul.f32 %v1213, %v1217
        %1219 = vrot.lane.b32.xlu0 %v1076, 48
        %v1220 = vpop.permute.xlu0 %1219
        %v1223 = vsel %vm747, %v1218, 0
        %1225 = vmatpush.msra.mxu0 0.0
        %1226 = vmatpush.msra.mxu0 0.0
        %1227 = vmatpush.msra.mxu0 0.0
        %1228 = vmatpush.msra.mxu0 0.0
        %1229 = vmatpush.msra.mxu0 0.0
        %1230 = vmatpush.msra.mxu0 0.0
        %1231 = vmatpush.msra.mxu0 0.0
        %1232 = vmatpush.msra.mxu0 0.0
        %1233 = vmatpush.msra.mxu0 0.0
        %1234 = vmatpush.msra.mxu0 0.0
        %1235 = vmatpush.msra.mxu0 0.0
        %1236 = vmatpush.msra.mxu0 0.0
        %1237 = vmatpush.msra.mxu0 0.0
        %1238 = vmatpush.msra.mxu0 0.0
        %1239 = vmatpush.msra.mxu0 0.0
        %1240 = vmatpush.msra.mxu0 %v1220
        %1241 = vmatmul.f32.gmra.mxu0 %v1223
        %v1242 = vpop.f32.mrf.mxu0
        %v1243 = vadd.f32 0.0, %v1242
        %1244 = vdwg.mxu0
        %v1246 = vsel %vm717, %v1243, 0
        %1248 = vmatpush.msra.mxu0 0.0
        %1249 = vmatpush.msra.mxu0 0.0
        %1250 = vmatpush.msra.mxu0 0.0
        %1251 = vmatpush.msra.mxu0 0.0
        %1252 = vmatpush.msra.mxu0 0.0
        %1253 = vmatpush.msra.mxu0 0.0
        %1254 = vmatpush.msra.mxu0 0.0
        %1255 = vmatpush.msra.mxu0 0.0
        %1256 = vmatpush.msra.mxu0 0.0
        %1257 = vmatpush.msra.mxu0 0.0
        %1258 = vmatpush.msra.mxu0 0.0
        %1259 = vmatpush.msra.mxu0 0.0
        %1260 = vmatpush.msra.mxu0 0.0
        %1261 = vmatpush.msra.mxu0 0.0
        %1262 = vmatpush.msra.mxu0 %v1082
        %1263 = vmatpush.msra.mxu0 %v1081
        %1264 = vmatmul.f32.gmra.mxu0 %v1246
        %v1265 = vpop.f32.mrf.mxu0
        %v1266 = vadd.f32 0.0, %v1265
        %1267 = vdwg.mxu0
        %v1268 = vadd.f32 %v1177, %v1266
        %v1269 = vadd.f32 %v1044, %v1268
        %s1270 = scalar_lea.vmem [#allocation10], 1
        %v1271 = vld [vmem:[%s1270] sm:$0x1]
        %s1272 = scalar_lea.vmem %s9, 1
        %v1273 = vld [vmem:[%s1272] sm:$0x1]
        %v1274 = vsel %vm640, %v1269, 0.0
        %1275 = vadd.xlane.f32.xlu0 %v1274
        %v1276 = vpop.xlane.xlu0 %1275
        %v1277 = vmul.f32 %v1276, %v650
        %v1278 = vsub.f32 %v1269, %v1277
        %v1279 = vmul.f32 %v1278, %v1278
        %v1280 = vsel %vm640, %v1279, 0.0
        %1281 = vadd.xlane.f32.xlu0 %v1280
        %v1282 = vpop.xlane.xlu0 %1281
        %v1283 = vmul.f32 %v1282, %v650
        %v1284 = vadd.f32 %v1283, 1e-12
        %v1285 = vrsqrt.pop %v1284
        %v1286 = vmul.f32 %v1285, %v1284
        %v1287 = vmul.f32 %v1286, %v1285
        %v1288 = vmul.f32 0.5, %v1287
        %v1289 = vsub.f32 1.5, %v1288
        %v1290 = vmul.f32 %v1285, %v1289
        %vm1291 = vweird.f32 %v1284
        %vm1292 = vweird.f32 %v1285
        %vm1293 = vmor %vm1291, %vm1292
        %v1294 = vsel %vm1293, %v1285, %v1290
        %v1295 = vmul.f32 %v1278, %v1294
        %v1297 = vperm.slane %v1271, 0
        %v1299 = vmul.f32 %v1295, %v1297
        %v1301 = vperm.slane %v1273, 0
        %v1303 = vadd.f32 %v1299, %v1301
        %s1304 = scalar_lea.vmem %s10, 32
        %v1305 = vld [vmem:[%s1304] sm:$0xff]
        %v1306 = vld [vmem:[%s1304 + $0x8] sm:$0xff]
        %v1307 = vld [vmem:[%s1304 + $0x10] sm:$0xff]
        %v1308 = vld [vmem:[%s1304 + $0x18] sm:$0xff]
        %s1309 = scalar_lea.vmem %s11, 1
        %v1310 = vld [vmem:[%s1309] sm:$0x1]
        %v1312 = vperm.slane %v1310, 0
        %v1315 = vsel %vm640, %v1303, 0
        %1317 = vmatpush.msra.mxu0 0.0
        %1318 = vmatpush.msra.mxu0 0.0
        %1319 = vmatpush.msra.mxu0 0.0
        %1320 = vmatpush.msra.mxu0 0.0
        %1321 = vmatpush.msra.mxu0 0.0
        %1322 = vmatpush.msra.mxu0 0.0
        %1323 = vmatpush.msra.mxu0 0.0
        %1324 = vmatpush.msra.mxu0 0.0
        %1325 = vmatpush.msra.mxu0 0.0
        %1326 = vmatpush.msra.mxu0 0.0
        %1327 = vmatpush.msra.mxu0 0.0
        %1328 = vmatpush.msra.mxu0 0.0
        %1329 = vmatpush.msra.mxu0 %v1308
        %1330 = vmatpush.msra.mxu0 %v1307
        %1331 = vmatpush.msra.mxu0 %v1306
        %1332 = vmatpush.msra.mxu0 %v1305
        %1333 = vmatmul.f32.gmra.mxu0 %v1315
        %v1334 = vpop.f32.mrf.mxu0
        %v1335 = vadd.f32 %v1312, %v1334
        %1336 = vdwg.mxu0
        %v1337 = vmul.f32 %v1335, 0.5
        %v1338 = vmul.f32 %v1335, 0.044715
        %v1339 = vmul.f32 %v1338, %v1335
        %v1340 = vmul.f32 %v1339, %v1335
        %v1341 = vadd.f32 %v1335, %v1340
        %v1342 = vmul.f32 %v1341, 0.7978846
        %v1343 = vtanh.pop %v1342
        %v1344 = vadd.f32 %v1343, 1.0
        %v1345 = vmul.f32 %v1337, %v1344
        %s1346 = scalar_lea.vmem %s12, 64
        %v1347 = vld [vmem:[%s1346] sm:$0xff]
        %v1348 = vld [vmem:[%s1346 + $0x8] sm:$0xff]
        %v1349 = vld [vmem:[%s1346 + $0x10] sm:$0xff]
        %v1350 = vld [vmem:[%s1346 + $0x18] sm:$0xff]
        %v1351 = vld [vmem:[%s1346 + $0x20] sm:$0xff]
        %v1352 = vld [vmem:[%s1346 + $0x28] sm:$0xff]
        %v1353 = vld [vmem:[%s1346 + $0x30] sm:$0xff]
        %v1354 = vld [vmem:[%s1346 + $0x38] sm:$0xff]
        %s1355 = scalar_lea.vmem %s13, 1
        %v1356 = vld [vmem:[%s1355] sm:$0x1]
        %v1358 = vperm.slane %v1356, 0
        %v1361 = vsel %vm988, %v1345, 0
        %1363 = vmatpush.msra.mxu0 0.0
        %1364 = vmatpush.msra.mxu0 0.0
        %1365 = vmatpush.msra.mxu0 0.0
        %1366 = vmatpush.msra.mxu0 0.0
        %1367 = vmatpush.msra.mxu0 0.0
        %1368 = vmatpush.msra.mxu0 0.0
        %1369 = vmatpush.msra.mxu0 0.0
        %1370 = vmatpush.msra.mxu0 0.0
        %1371 = vmatpush.msra.mxu0 %v1354
        %1372 = vmatpush.msra.mxu0 %v1353
        %1373 = vmatpush.msra.mxu0 %v1352
        %1374 = vmatpush.msra.mxu0 %v1351
        %1375 = vmatpush.msra.mxu0 %v1350
        %1376 = vmatpush.msra.mxu0 %v1349
        %1377 = vmatpush.msra.mxu0 %v1348
        %1378 = vmatpush.msra.mxu0 %v1347
        %1379 = vmatmul.f32.gmra.mxu0 %v1361
        %v1380 = vpop.f32.mrf.mxu0
        %v1381 = vadd.f32 %v1358, %v1380
        %1382 = vdwg.mxu0
        %v1383 = vadd.f32 %v1303, %v1381
        %s1384 = scalar_lea.vmem [#allocation11], 1
        %v1385 = vld [vmem:[%s1384] sm:$0x1]
        %s1386 = scalar_lea.vmem %s15, 1
        %v1387 = vld [vmem:[%s1386] sm:$0x1]
        %v1388 = vsel %vm640, %v1383, 0.0
        %1389 = vadd.xlane.f32.xlu0 %v1388
        %v1390 = vpop.xlane.xlu0 %1389
        %v1391 = vmul.f32 %v1390, %v650
        %v1392 = vsub.f32 %v1383, %v1391
        %v1393 = vmul.f32 %v1392, %v1392
        %v1394 = vsel %vm640, %v1393, 0.0
        %1395 = vadd.xlane.f32.xlu0 %v1394
        %v1396 = vpop.xlane.xlu0 %1395
        %v1397 = vmul.f32 %v1396, %v650
        %v1398 = vadd.f32 %v1397, 1e-12
        %v1399 = vrsqrt.pop %v1398
        %v1400 = vmul.f32 %v1399, %v1398
        %v1401 = vmul.f32 %v1400, %v1399
        %v1402 = vmul.f32 0.5, %v1401
        %v1403 = vsub.f32 1.5, %v1402
        %v1404 = vmul.f32 %v1399, %v1403
        %vm1405 = vweird.f32 %v1398
        %vm1406 = vweird.f32 %v1399
        %vm1407 = vmor %vm1405, %vm1406
        %v1408 = vsel %vm1407, %v1399, %v1404
        %v1409 = vmul.f32 %v1392, %v1408
        %v1411 = vperm.slane %v1385, 0
        %v1413 = vmul.f32 %v1409, %v1411
        %v1415 = vperm.slane %v1387, 0
        %v1417 = vadd.f32 %v1413, %v1415
        %1418 = vst.msk [vmem:[%s635] sm:$0xff] %vm640, %v1417
        %s1419 = sand.u32 %s392, 1
        %s1420 = scalar_lea.sflag [#allocation4], %s1419
        %s1421 = sand.u32 %s392, 1
        %s1422 = smul.addr %s1421, 8
        %s1423 = scalar_lea.vmem [#allocation13], %s1422
        // Predicated region
        $region109: #{tpu_custom_call.1} parent=83 // pred_check
          %p1424 = pneg %p402
        $region110: #{tpu_custom_call.1} parent=83 // pred_check_branch
          %1426 = sbr.rel (%p1424) target = $region112
        $region111: #{tpu_custom_call.1} parent=83 // pred_region
          %1428 = vsyncadd %s1420, 0
          %s1429 = smul.addr %s38, 8
          %s1430 = scalar_lea.hbm %s16, %s1429
          %s1432 = sshll.u32 %s1423, 4
          %s1433 = int_to_ptr.vmem [resolvable:$true] %s1432
          %s1434 = sshll.u32 %s1430, 4
          %s1435 = int_to_ptr.hbm [resolvable:$true] %s1434
          %1437 = dma.vmem_to_hbm [thread:$0]  %s1433, 128, %s1435, %s1420
        $region112: #{tpu_custom_call.1} parent=83 // pred_fallthru
          _
      $region84: #{tpu_custom_call.1} parent=5 // pred_fallthru
        _
      %p1438 = scmp.le.s32.totalorder 2, %s33
      // Predicated region
      $region113: #{tpu_custom_call.1} parent=5 // pred_check
        %p1439 = pneg %p1438
      $region114: #{tpu_custom_call.1} parent=5 // pred_check_branch
        %1441 = sbr.rel (%p1439) target = $region116
      $region115: #{tpu_custom_call.1} parent=5 // pred_region
        %s1442 = ssub.s32 %s33, 2
        // Predicated region
        $region117: #{tpu_custom_call.1} parent=115 // pred_check
          %p1443 = pneg %p408
        $region118: #{tpu_custom_call.1} parent=115 // pred_check_branch
          %1445 = sbr.rel (%p1443) target = $region120
        $region119: #{tpu_custom_call.1} parent=115 // pred_region
          %s1446 = sand.u32 %s393, 1
          %s1447 = scalar_lea.sflag [#allocation4], %s1446
          %s1448 = sand.u32 %s393, 1
          %s1449 = smul.addr %s1448, 8
          %s1450 = scalar_lea.vmem [#allocation13], %s1449
          %1452 = dma.done %s1447, 128
        $region120: #{tpu_custom_call.1} parent=115 // pred_fallthru
          _
      $region116: #{tpu_custom_call.1} parent=5 // pred_fallthru
        _
    $region6: #{tpu_custom_call.1} parent=1 // loop_footer
      %s37 = sadd.s32 1, %s33
    $region7: #{tpu_custom_call.1} parent=1 // loop_footer_branch
      %32 = sbr.rel target = $region3
    $region8: #{tpu_custom_call.1} parent=1 // loop_exit
      _
    %1453 = vsyncpa [#allocation3], 1
    %s1454 = scalar_lea.sflag [#allocation3], 1
    %1455 = vsyncpa %s1454, 1
    %1456 = vsyncpa [#allocation6], 1
    %s1457 = scalar_lea.sflag [#allocation6], 1
    %1458 = vsyncpa %s1457, 1
    %1459 = vsyncpa [#allocation9], 1
    %1460 = vsyncpa [#allocation12], 1
    %1461 = vsyncpa [#allocation4], 1
    %s1462 = scalar_lea.sflag [#allocation4], 1
    %1463 = vsyncpa %s1462, 1

</llo_original>
